<compile_context>
chip_gen: v7x
topology: tpu7x:2x2x1
jax: 0.10.0
libtpu: 0.0.40
codegen_flags: <defaults>
</compile_context>

<pallas_src>
import jax
import jax.numpy as jnp
from jax.experimental import pallas as pl
from jax.experimental.pallas import tpu as pltpu


def _round_up(x, m):
    return (x + m - 1) // m * m


def vae_forward_kernel(
    x_ref,                 # (TB, D_in) f32
    w1_ref, b1_ref,        # encoder Linear: (D_in, H) bf16, (1, H) f32
    wml_ref, bml_ref,      # fused mu|logvar: (H, 2L) bf16, (1, 2L) f32
    wd1_ref, bd1_ref,      # decoder Lin 1: (L, H) bf16, (1, H) f32
    wd2_ref, bd2_ref,      # decoder Lin 2: (H, D_in) bf16, (1, D_in) f32
    eps_ref,               # (TB, L) f32 standard normal noise
    recon_ref, mu_ref, logvar_ref,   # outputs, f32
):
    L = mu_ref.shape[-1]

    # Encoder: Linear + ReLU (bf16 MXU inputs, f32 accumulation).
    x = x_ref[...].astype(jnp.bfloat16)
    h = jnp.dot(x, w1_ref[...], preferred_element_type=jnp.float32) + b1_ref[...]
    h = jnp.maximum(h, 0.0)

    # Fused mu|logvar head: single N=2L matmul, then lane-aligned slices.
    ml = jnp.dot(h.astype(jnp.bfloat16), wml_ref[...],
                 preferred_element_type=jnp.float32) + bml_ref[...]
    mu = ml[:, :L]
    logvar = ml[:, L:]

    # Reparameterization: z = mu + eps * exp(0.5 * logvar)   (exp on EUP)
    std = jnp.exp(0.5 * logvar)
    z = mu + eps_ref[...] * std

    # Decoder: Linear + ReLU
    hd = jnp.dot(z.astype(jnp.bfloat16), wd1_ref[...],
                 preferred_element_type=jnp.float32) + bd1_ref[...]
    hd = jnp.maximum(hd, 0.0)

    # Decoder: Linear + Sigmoid (exp + approx reciprocal -> EUP slot).
    logits = jnp.dot(hd.astype(jnp.bfloat16), wd2_ref[...],
                     preferred_element_type=jnp.float32) + bd2_ref[...]
    recon_ref[...] = pl.reciprocal(1.0 + jnp.exp(-logits), approx=True)

    mu_ref[...] = mu
    logvar_ref[...] = logvar


def vae_forward(x_nchw, params, eps):
    """x_nchw: (B, C, H, W) float32.  Returns (x_recon, mu, logvar), each (B, ...)."""
    B = x_nchw.shape[0]
    x_flat = x_nchw.reshape(B, -1).astype(jnp.float32)      # nn.Flatten()
    D_in = x_flat.shape[1]
    H = params["w1"].shape[1]
    L = params["wd1"].shape[0]

    # Pad the batch so the sublane dim is a multiple of 8; tile it over a grid.
    TB = 128
    B_pad = _round_up(B, 8)
    if B_pad <= TB:
        TB = B_pad
    else:
        B_pad = _round_up(B, TB)
    if B_pad != B:
        pad = B_pad - B
        x_flat = jnp.pad(x_flat, ((0, pad), (0, 0)))
        eps = jnp.pad(eps, ((0, pad), (0, 0)))

    grid = (B_pad // TB,)

    def row_spec(n):
        return pl.BlockSpec((TB, n), lambda i: (i, 0))

    def full_spec(a):
        # Weight/bias stays resident: same block for every grid step.
        return pl.BlockSpec(a.shape, lambda i: (0, 0))

    # Advisory cost estimate for the XLA scheduler.
    flops = 2 * B_pad * (D_in * H + H * 2 * L + L * H + H * D_in)
    transcendentals = B_pad * (L + 2 * D_in)
    bytes_accessed = (
        x_flat.size * 4 + eps.size * 4
        + sum(int(p.size) * p.dtype.itemsize for p in params.values())
        + B_pad * (D_in + 2 * L) * 4
    )

    out_shapes = (
        jax.ShapeDtypeStruct((B_pad, D_in), jnp.float32),   # x_recon
        jax.ShapeDtypeStruct((B_pad, L), jnp.float32),      # mu
        jax.ShapeDtypeStruct((B_pad, L), jnp.float32),      # logvar
    )

    fn = pl.pallas_call(
        vae_forward_kernel,
        out_shape=out_shapes,
        grid=grid,
        in_specs=[
            row_spec(D_in),                                   # x
            full_spec(params["w1"]), full_spec(params["b1"]),
            full_spec(params["wml"]), full_spec(params["bml"]),
            full_spec(params["wd1"]), full_spec(params["bd1"]),
            full_spec(params["wd2"]), full_spec(params["bd2"]),
            row_spec(L),                                      # eps
        ],
        out_specs=(row_spec(D_in), row_spec(L), row_spec(L)),
        compiler_params=pltpu.CompilerParams(
            dimension_semantics=("parallel",)),
        cost_estimate=pl.CostEstimate(
            flops=flops,
            transcendentals=transcendentals,
            bytes_accessed=bytes_accessed),
    )
    recon, mu, logvar = fn(
        x_flat,
        params["w1"], params["b1"],
        params["wml"], params["bml"],
        params["wd1"], params["bd1"],
        params["wd2"], params["bd2"],
        eps,
    )
    # Drop padded rows.
    return recon[:B], mu[:B], logvar[:B]


def init_params(key, input_dim, hidden_dim, latent_dim):
    ks = jax.random.split(key, 10)
    s = 0.02

    def lin(kw, kb, din, dout):
        w = jax.random.normal(kw, (din, dout), jnp.float32) * s
        b = jax.random.normal(kb, (1, dout), jnp.float32) * s
        return w, b

    w1, b1 = lin(ks[0], ks[1], input_dim, hidden_dim)
    wmu, bmu = lin(ks[2], ks[3], hidden_dim, latent_dim)
    wlv, blv = lin(ks[4], ks[5], hidden_dim, latent_dim)
    wd1, bd1 = lin(ks[6], ks[7], latent_dim, hidden_dim)
    wd2, bd2 = lin(ks[8], ks[9], hidden_dim, input_dim)

    # Fuse mu/logvar heads; store weights in bf16 (halves HBM traffic),
    # keep biases in f32 for the epilogue math.
    wml = jnp.concatenate([wmu, wlv], axis=1)
    bml = jnp.concatenate([bmu, blv], axis=1)
    bf = jnp.bfloat16
    return dict(
        w1=w1.astype(bf), b1=b1,
        wml=wml.astype(bf), bml=bml,
        wd1=wd1.astype(bf), bd1=bd1,
        wd2=wd2.astype(bf), bd2=bd2,
    )


def ref_forward(x_nchw, params, eps):
    """Pure-JAX reference mirroring the kernel's precision choices."""
    xf = x_nchw.reshape(x_nchw.shape[0], -1).astype(jnp.float32)
    L = params["wd1"].shape[0]

    def mm(a, w):
        return jnp.dot(a.astype(jnp.bfloat16), w,
                       preferred_element_type=jnp.float32)

    h = jnp.maximum(mm(xf, params["w1"]) + params["b1"], 0.0)
    ml = mm(h, params["wml"]) + params["bml"]
    mu = ml[:, :L]
    lv = ml[:, L:]
    z = mu + eps * jnp.exp(0.5 * lv)
    hd = jnp.maximum(mm(z, params["wd1"]) + params["bd1"], 0.0)
    logits = mm(hd, params["wd2"]) + params["bd2"]
    return jax.nn.sigmoid(logits), mu, lv


# TODO(synk): loss_function (BCE + KL) is not part of forward(); not implemented here.

if __name__ == "__main__":
    # Small shapes consistent with the module: NCHW image input, flattened by the encoder.
    B, C, Hs, Ws = 2, 4, 16, 16
    input_dim = C * Hs * Ws          # 1024
    hidden_dim = 256
    latent_dim = 128

    key = jax.random.PRNGKey(0)
    kx, kp, ke = jax.random.split(key, 3)

    x = jax.random.uniform(kx, (B, C, Hs, Ws), jnp.float32)   # image-like, in [0,1]
    params = init_params(kp, input_dim, hidden_dim, latent_dim)
    eps = jax.random.normal(ke, (B, latent_dim), jnp.float32)  # randn_like(std), passed in

    x_recon, mu, logvar = vae_forward(x, params, eps)
    jax.block_until_ready((x_recon, mu, logvar))

    # Sanity checks (shapes / loose value range, tolerant of bf16 + approx recip).
    assert x_recon.shape == (B, input_dim)
    assert mu.shape == (B, latent_dim) and logvar.shape == (B, latent_dim)
    assert bool(jnp.all(jnp.isfinite(x_recon)))
    assert bool(jnp.all(x_recon >= -1e-3)) and bool(jnp.all(x_recon <= 1.0 + 1e-3))

    rec_r, mu_r, lv_r = ref_forward(x, params, eps)
    assert jnp.allclose(x_recon, rec_r, atol=1e-2, rtol=1e-2)
    assert jnp.allclose(mu, mu_r, atol=1e-2, rtol=1e-2)
    assert jnp.allclose(logvar, lv_r, atol=1e-2, rtol=1e-2)

    print("KERNEL_OK")
</pallas_src>

<mosaic_0001>
module attributes {stable_mosaic.version = 11 : i64} {
  func.func @vae_forward_kernel(%arg0: i32, %arg1: memref<8x1024xf32, #tpu.memory_space<vmem>>, %arg2: memref<1024x256xbf16, #tpu.memory_space<vmem>>, %arg3: memref<1x256xf32, #tpu.memory_space<vmem>>, %arg4: memref<256x256xbf16, #tpu.memory_space<vmem>>, %arg5: memref<1x256xf32, #tpu.memory_space<vmem>>, %arg6: memref<128x256xbf16, #tpu.memory_space<vmem>>, %arg7: memref<1x256xf32, #tpu.memory_space<vmem>>, %arg8: memref<256x1024xbf16, #tpu.memory_space<vmem>>, %arg9: memref<1x1024xf32, #tpu.memory_space<vmem>>, %arg10: memref<8x128xf32, #tpu.memory_space<vmem>>, %arg11: memref<8x1024xf32, #tpu.memory_space<vmem>>, %arg12: memref<8x128xf32, #tpu.memory_space<vmem>>, %arg13: memref<8x128xf32, #tpu.memory_space<vmem>>) attributes {dimension_semantics = [#tpu.dimension_semantics<parallel>], iteration_bounds = array<i64: 1>, scalar_prefetch = 0 : i64, scratch_operands = 0 : i64, tpu.core_type = #tpu.core_type<tc>, window_params = [{transform_indices = @transform_0, window_bounds = array<i64: 8, 1024>}, {pipeline_mode = #tpu.pipeline_mode<synchronous>, transform_indices = @transform_1, window_bounds = array<i64: 1024, 256>}, {pipeline_mode = #tpu.pipeline_mode<synchronous>, transform_indices = @transform_2, window_bounds = array<i64: 1, 256>}, {pipeline_mode = #tpu.pipeline_mode<synchronous>, transform_indices = @transform_3, window_bounds = array<i64: 256, 256>}, {pipeline_mode = #tpu.pipeline_mode<synchronous>, transform_indices = @transform_4, window_bounds = array<i64: 1, 256>}, {pipeline_mode = #tpu.pipeline_mode<synchronous>, transform_indices = @transform_5, window_bounds = array<i64: 128, 256>}, {pipeline_mode = #tpu.pipeline_mode<synchronous>, transform_indices = @transform_6, window_bounds = array<i64: 1, 256>}, {pipeline_mode = #tpu.pipeline_mode<synchronous>, transform_indices = @transform_7, window_bounds = array<i64: 256, 1024>}, {pipeline_mode = #tpu.pipeline_mode<synchronous>, transform_indices = @transform_8, window_bounds = array<i64: 1, 1024>}, {transform_indices = @transform_9, window_bounds = array<i64: 8, 128>}, {transform_indices = @transform_10, window_bounds = array<i64: 8, 1024>}, {transform_indices = @transform_11, window_bounds = array<i64: 8, 128>}, {transform_indices = @transform_12, window_bounds = array<i64: 8, 128>}]} {
    %c0 = arith.constant 0 : index
    %c0_0 = arith.constant 0 : index
    %0 = vector.load %arg1[%c0, %c0_0] : memref<8x1024xf32, #tpu.memory_space<vmem>>, vector<8x1024xf32>
    %1 = arith.truncf %0 : vector<8x1024xf32> to vector<8x1024xbf16>
    %c0_1 = arith.constant 0 : index
    %c0_2 = arith.constant 0 : index
    %2 = vector.load %arg2[%c0_1, %c0_2] : memref<1024x256xbf16, #tpu.memory_space<vmem>>, vector<1024x256xbf16>
    %cst = arith.constant dense<0.000000e+00> : vector<8x256xf32>
    %3 = tpu.matmul %1, %2, %cst {dimension_numbers = #tpu.dot_dimension_numbers<[1], [0], [0], [1], [0, 0, 1, 1], [], []>} : vector<8x1024xbf16>, vector<1024x256xbf16>, vector<8x256xf32> -> vector<8x256xf32>
    %c0_3 = arith.constant 0 : index
    %c0_4 = arith.constant 0 : index
    %4 = vector.load %arg3[%c0_3, %c0_4] : memref<1x256xf32, #tpu.memory_space<vmem>>, vector<1x256xf32>
    %5 = vector.broadcast %4 : vector<1x256xf32> to vector<8x256xf32>
    %6 = arith.addf %3, %5 : vector<8x256xf32>
    %cst_5 = arith.constant 0.000000e+00 : f32
    %7 = vector.broadcast %cst_5 : f32 to vector<8x256xf32>
    %8 = arith.maximumf %6, %7 : vector<8x256xf32>
    %9 = arith.truncf %8 : vector<8x256xf32> to vector<8x256xbf16>
    %c0_6 = arith.constant 0 : index
    %c0_7 = arith.constant 0 : index
    %10 = vector.load %arg4[%c0_6, %c0_7] : memref<256x256xbf16, #tpu.memory_space<vmem>>, vector<256x256xbf16>
    %cst_8 = arith.constant dense<0.000000e+00> : vector<8x256xf32>
    %11 = tpu.matmul %9, %10, %cst_8 {dimension_numbers = #tpu.dot_dimension_numbers<[1], [0], [0], [1], [0, 0, 1, 1], [], []>} : vector<8x256xbf16>, vector<256x256xbf16>, vector<8x256xf32> -> vector<8x256xf32>
    %c0_9 = arith.constant 0 : index
    %c0_10 = arith.constant 0 : index
    %12 = vector.load %arg5[%c0_9, %c0_10] : memref<1x256xf32, #tpu.memory_space<vmem>>, vector<1x256xf32>
    %13 = vector.broadcast %12 : vector<1x256xf32> to vector<8x256xf32>
    %14 = arith.addf %11, %13 : vector<8x256xf32>
    %15 = vector.extract_strided_slice %14 {offsets = [0, 0], sizes = [8, 128], strides = [1, 1]} : vector<8x256xf32> to vector<8x128xf32>
    %16 = vector.extract_strided_slice %14 {offsets = [0, 128], sizes = [8, 128], strides = [1, 1]} : vector<8x256xf32> to vector<8x128xf32>
    %cst_11 = arith.constant 5.000000e-01 : f32
    %17 = vector.broadcast %cst_11 : f32 to vector<8x128xf32>
    %18 = arith.mulf %17, %16 : vector<8x128xf32>
    %19 = math.exp %18 : vector<8x128xf32>
    %c0_12 = arith.constant 0 : index
    %c0_13 = arith.constant 0 : index
    %20 = vector.load %arg10[%c0_12, %c0_13] : memref<8x128xf32, #tpu.memory_space<vmem>>, vector<8x128xf32>
    %21 = arith.mulf %20, %19 : vector<8x128xf32>
    %22 = arith.addf %15, %21 : vector<8x128xf32>
    %23 = arith.truncf %22 : vector<8x128xf32> to vector<8x128xbf16>
    %c0_14 = arith.constant 0 : index
    %c0_15 = arith.constant 0 : index
    %24 = vector.load %arg6[%c0_14, %c0_15] : memref<128x256xbf16, #tpu.memory_space<vmem>>, vector<128x256xbf16>
    %cst_16 = arith.constant dense<0.000000e+00> : vector<8x256xf32>
    %25 = tpu.matmul %23, %24, %cst_16 {dimension_numbers = #tpu.dot_dimension_numbers<[1], [0], [0], [1], [0, 0, 1, 1], [], []>} : vector<8x128xbf16>, vector<128x256xbf16>, vector<8x256xf32> -> vector<8x256xf32>
    %c0_17 = arith.constant 0 : index
    %c0_18 = arith.constant 0 : index
    %26 = vector.load %arg7[%c0_17, %c0_18] : memref<1x256xf32, #tpu.memory_space<vmem>>, vector<1x256xf32>
    %27 = vector.broadcast %26 : vector<1x256xf32> to vector<8x256xf32>
    %28 = arith.addf %25, %27 : vector<8x256xf32>
    %cst_19 = arith.constant 0.000000e+00 : f32
    %29 = vector.broadcast %cst_19 : f32 to vector<8x256xf32>
    %30 = arith.maximumf %28, %29 : vector<8x256xf32>
    %31 = arith.truncf %30 : vector<8x256xf32> to vector<8x256xbf16>
    %c0_20 = arith.constant 0 : index
    %c0_21 = arith.constant 0 : index
    %32 = vector.load %arg8[%c0_20, %c0_21] : memref<256x1024xbf16, #tpu.memory_space<vmem>>, vector<256x1024xbf16>
    %cst_22 = arith.constant dense<0.000000e+00> : vector<8x1024xf32>
    %33 = tpu.matmul %31, %32, %cst_22 {dimension_numbers = #tpu.dot_dimension_numbers<[1], [0], [0], [1], [0, 0, 1, 1], [], []>} : vector<8x256xbf16>, vector<256x1024xbf16>, vector<8x1024xf32> -> vector<8x1024xf32>
    %c0_23 = arith.constant 0 : index
    %c0_24 = arith.constant 0 : index
    %34 = vector.load %arg9[%c0_23, %c0_24] : memref<1x1024xf32, #tpu.memory_space<vmem>>, vector<1x1024xf32>
    %35 = vector.broadcast %34 : vector<1x1024xf32> to vector<8x1024xf32>
    %36 = arith.addf %33, %35 : vector<8x1024xf32>
    %cst_25 = arith.constant 0.000000e+00 : f32
    %37 = vector.broadcast %cst_25 : f32 to vector<8x1024xf32>
    %38 = arith.subf %37, %36 : vector<8x1024xf32>
    %39 = math.exp %38 : vector<8x1024xf32>
    %cst_26 = arith.constant 1.000000e+00 : f32
    %40 = vector.broadcast %cst_26 : f32 to vector<8x1024xf32>
    %41 = arith.addf %40, %39 : vector<8x1024xf32>
    %42 = tpu.reciprocal %41 {approx = true} : vector<8x1024xf32> -> vector<8x1024xf32>
    %c0_27 = arith.constant 0 : index
    %c0_28 = arith.constant 0 : index
    %43 = vector.load %arg11[%c0_27, %c0_28] : memref<8x1024xf32, #tpu.memory_space<vmem>>, vector<8x1024xf32>
    tpu.vector_store %arg11[%c0_27, %c0_28], %42 {strides = array<i32>} : memref<8x1024xf32, #tpu.memory_space<vmem>>, vector<8x1024xf32>,
    %c0_29 = arith.constant 0 : index
    %c0_30 = arith.constant 0 : index
    %44 = vector.load %arg12[%c0_29, %c0_30] : memref<8x128xf32, #tpu.memory_space<vmem>>, vector<8x128xf32>
    tpu.vector_store %arg12[%c0_29, %c0_30], %15 {strides = array<i32>} : memref<8x128xf32, #tpu.memory_space<vmem>>, vector<8x128xf32>,
    %c0_31 = arith.constant 0 : index
    %c0_32 = arith.constant 0 : index
    %45 = vector.load %arg13[%c0_31, %c0_32] : memref<8x128xf32, #tpu.memory_space<vmem>>, vector<8x128xf32>
    tpu.vector_store %arg13[%c0_31, %c0_32], %16 {strides = array<i32>} : memref<8x128xf32, #tpu.memory_space<vmem>>, vector<8x128xf32>,
    return
  }
  func.func @transform_0(%arg0: i32) -> (i32, i32) {
    %c0_i32 = arith.constant 0 : i32
    %c0_i32_0 = arith.constant 0 : i32
    return %arg0, %c0_i32 : i32, i32
  }
  func.func @transform_1(%arg0: i32) -> (i32, i32) {
    %c0_i32 = arith.constant 0 : i32
    %c0_i32_0 = arith.constant 0 : i32
    %c0_i32_1 = arith.constant 0 : i32
    return %c0_i32, %c0_i32_0 : i32, i32
  }
  func.func @transform_2(%arg0: i32) -> (i32, i32) {
    %c0_i32 = arith.constant 0 : i32
    %c0_i32_0 = arith.constant 0 : i32
    %c0_i32_1 = arith.constant 0 : i32
    return %c0_i32, %c0_i32_0 : i32, i32
  }
  func.func @transform_3(%arg0: i32) -> (i32, i32) {
    %c0_i32 = arith.constant 0 : i32
    %c0_i32_0 = arith.constant 0 : i32
    %c0_i32_1 = arith.constant 0 : i32
    return %c0_i32, %c0_i32_0 : i32, i32
  }
  func.func @transform_4(%arg0: i32) -> (i32, i32) {
    %c0_i32 = arith.constant 0 : i32
    %c0_i32_0 = arith.constant 0 : i32
    %c0_i32_1 = arith.constant 0 : i32
    return %c0_i32, %c0_i32_0 : i32, i32
  }
  func.func @transform_5(%arg0: i32) -> (i32, i32) {
    %c0_i32 = arith.constant 0 : i32
    %c0_i32_0 = arith.constant 0 : i32
    %c0_i32_1 = arith.constant 0 : i32
    return %c0_i32, %c0_i32_0 : i32, i32
  }
  func.func @transform_6(%arg0: i32) -> (i32, i32) {
    %c0_i32 = arith.constant 0 : i32
    %c0_i32_0 = arith.constant 0 : i32
    %c0_i32_1 = arith.constant 0 : i32
    return %c0_i32, %c0_i32_0 : i32, i32
  }
  func.func @transform_7(%arg0: i32) -> (i32, i32) {
    %c0_i32 = arith.constant 0 : i32
    %c0_i32_0 = arith.constant 0 : i32
    %c0_i32_1 = arith.constant 0 : i32
    return %c0_i32, %c0_i32_0 : i32, i32
  }
  func.func @transform_8(%arg0: i32) -> (i32, i32) {
    %c0_i32 = arith.constant 0 : i32
    %c0_i32_0 = arith.constant 0 : i32
    %c0_i32_1 = arith.constant 0 : i32
    return %c0_i32, %c0_i32_0 : i32, i32
  }
  func.func @transform_9(%arg0: i32) -> (i32, i32) {
    %c0_i32 = arith.constant 0 : i32
    %c0_i32_0 = arith.constant 0 : i32
    return %arg0, %c0_i32 : i32, i32
  }
  func.func @transform_10(%arg0: i32) -> (i32, i32) {
    %c0_i32 = arith.constant 0 : i32
    %c0_i32_0 = arith.constant 0 : i32
    return %arg0, %c0_i32 : i32, i32
  }
  func.func @transform_11(%arg0: i32) -> (i32, i32) {
    %c0_i32 = arith.constant 0 : i32
    %c0_i32_0 = arith.constant 0 : i32
    return %arg0, %c0_i32 : i32, i32
  }
  func.func @transform_12(%arg0: i32) -> (i32, i32) {
    %c0_i32 = arith.constant 0 : i32
    %c0_i32_0 = arith.constant 0 : i32
    return %arg0, %c0_i32 : i32, i32
  }
}

</mosaic_0001>

<llo_original>
// kernel: tpu_custom_call.1
$region0: #{tpu_custom_call.1}
  #allocation0 [shape = 'u32[]', space=smem, size = 0x4, offset = 0x4, fixed_abs, tag = 'smem constant byte address 0x4 - core index']
  #allocation1 [shape = 'u32[144,128]{1,0:T(1,128)}', space=vmem, size = 0x12000, scoped, tag = 'internal scratch']
  %s0 = inlined_call_operand.hbm [shape: f32[8,1024], index: 0, kind: input, shape index: {}]
  %s1 = inlined_call_operand.hbm [shape: bf16[1024,256], index: 1, kind: input, shape index: {}]
  %s2 = inlined_call_operand.vmem [shape: f32[1,256], index: 2, kind: input, shape index: {}]
  %s3 = inlined_call_operand.hbm [shape: bf16[256,256], index: 3, kind: input, shape index: {}]
  %s4 = inlined_call_operand.hbm [shape: f32[1,256], index: 4, kind: input, shape index: {}]
  %s5 = inlined_call_operand.hbm [shape: bf16[128,256], index: 5, kind: input, shape index: {}]
  %s6 = inlined_call_operand.vmem [shape: f32[1,256], index: 6, kind: input, shape index: {}]
  %s7 = inlined_call_operand.hbm [shape: bf16[256,1024], index: 7, kind: input, shape index: {}]
  %s8 = inlined_call_operand.vmem [shape: f32[1,1024], index: 8, kind: input, shape index: {}]
  %s9 = inlined_call_operand.vmem [shape: f32[8,128], index: 9, kind: input, shape index: {}]
  %s10 = inlined_call_operand.hbm [shape: f32[8,1024], index: 10, kind: output, shape index: {0}]
  %s11 = inlined_call_operand.hbm [shape: f32[8,128], index: 11, kind: output, shape index: {1}]
  %s12 = inlined_call_operand.hbm [shape: f32[8,128], index: 12, kind: output, shape index: {2}]
  %13 = xla_tuple %s10, %s11, %s12
  %s14 = sld [smem:[#allocation0]]
  $region90: #{tpu_custom_call.1} parent=0
    _
  %s16 = ssub.s32 1, %s14
  %s17 = scalar_select 0, %s16, %s14
  $region1: #{tpu_custom_call.1} parent=0
    #allocation2 [shape = 'u8[32768]{0}', space=vmem, size = 0x8000, scoped, tag = 'input window, operand 0, single buffered']
    #allocation3 [shape = 's32[1]{0}', space=sflag, size = 0x4, scoped, tag = 'scoped memory for tpu_custom_call.1']
    #allocation4 [shape = 's32[1]{0}', space=sflag, size = 0x4, scoped, tag = 'scoped memory for tpu_custom_call.1']
    #allocation5 [shape = 'u8[524288]{0}', space=vmem, size = 0x80000, scoped, tag = 'input window, operand 1, single buffered']
    #allocation6 [shape = 's32[1]{0}', space=sflag, size = 0x4, scoped, tag = 'scoped memory for tpu_custom_call.1']
    #allocation7 [shape = 'u8[131072]{0}', space=vmem, size = 0x20000, scoped, tag = 'input window, operand 3, single buffered']
    #allocation8 [shape = 'u8[1024]{0}', space=vmem, size = 0x400, scoped, tag = 'input window, operand 4, single buffered']
    #allocation9 [shape = 's32[1]{0}', space=sflag, size = 0x4, scoped, tag = 'scoped memory for tpu_custom_call.1']
    #allocation10 [shape = 'u8[65536]{0}', space=vmem, size = 0x10000, scoped, tag = 'input window, operand 5, single buffered']
    #allocation11 [shape = 'u8[524288]{0}', space=vmem, size = 0x80000, scoped, tag = 'input window, operand 7, single buffered']
    #allocation12 [shape = 's32[1]{0}', space=sflag, size = 0x4, scoped, tag = 'scoped memory for tpu_custom_call.1']
    #allocation13 [shape = 'u8[32768]{0}', space=vmem, size = 0x8000, scoped, tag = 'output window, operand 0, single buffered']
    #allocation14 [shape = 'u8[4096]{0}', space=vmem, size = 0x1000, scoped, tag = 'output window, operand 1, single buffered']
    #allocation15 [shape = 's32[1]{0}', space=sflag, size = 0x4, scoped, tag = 'scoped memory for tpu_custom_call.1']
    #allocation16 [shape = 'u8[4096]{0}', space=vmem, size = 0x1000, scoped, tag = 'output window, operand 2, single buffered']
    %18 = vsyncpa [#allocation3], 0
    %19 = vsyncpa [#allocation6], 0
    %20 = vsyncpa [#allocation9], 0
    %21 = vsyncpa [#allocation12], 0
    %22 = vsyncpa [#allocation4], 0
    %23 = vsyncpa [#allocation15], 0
    // Predicated region
    $region2: #{tpu_custom_call.1} parent=1 // pred_check
      _
    $region3: #{tpu_custom_call.1} parent=1 // pred_check_branch
      %25 = sbr.rel (0) target = $region5
    $region4: #{tpu_custom_call.1} parent=1 // pred_region
      %s27 = ssub.s32 1024, 1024
      %28 = vsyncadd [#allocation3], %s27
      %s30 = sshll.u32 [#allocation2], 4
      %s31 = int_to_ptr.vmem [resolvable:$true] %s30
      %33 = dma.hbm_to_vmem [thread:$0]  %s0, 1024, %s31, [#allocation3]
    $region5: #{tpu_custom_call.1} parent=1 // pred_fallthru
      _
    // Predicated region
    $region6: #{tpu_custom_call.1} parent=1 // pred_check
      _
    $region7: #{tpu_custom_call.1} parent=1 // pred_check_branch
      %35 = sbr.rel (0) target = $region9
    $region8: #{tpu_custom_call.1} parent=1 // pred_region
      %s37 = ssub.s32 16384, 16384
      %38 = vsyncadd [#allocation6], %s37
      %s39 = sshll.u32 [#allocation5], 4
      %s40 = int_to_ptr.vmem [resolvable:$true] %s39
      %45 = dma.hbm_to_vmem [thread:$0]  %s1, 16384, %s40, [#allocation6], 128, 128, 8
    $region9: #{tpu_custom_call.1} parent=1 // pred_fallthru
      _
    // Predicated region
    $region10: #{tpu_custom_call.1} parent=1 // pred_check
      _
    $region11: #{tpu_custom_call.1} parent=1 // pred_check_branch
      %47 = sbr.rel (0) target = $region13
    $region12: #{tpu_custom_call.1} parent=1 // pred_region
      _
    $region13: #{tpu_custom_call.1} parent=1 // pred_fallthru
      _
    // Predicated region
    $region14: #{tpu_custom_call.1} parent=1 // pred_check
      _
    $region15: #{tpu_custom_call.1} parent=1 // pred_check_branch
      %49 = sbr.rel (0) target = $region17
    $region16: #{tpu_custom_call.1} parent=1 // pred_region
      %s51 = ssub.s32 4096, 4096
      %52 = vsyncadd [#allocation6], %s51
      %s53 = sshll.u32 [#allocation7], 4
      %s54 = int_to_ptr.vmem [resolvable:$true] %s53
      %59 = dma.hbm_to_vmem [thread:$0]  %s3, 4096, %s54, [#allocation6], 128, 128, 8
    $region17: #{tpu_custom_call.1} parent=1 // pred_fallthru
      _
    // Predicated region
    $region18: #{tpu_custom_call.1} parent=1 // pred_check
      _
    $region19: #{tpu_custom_call.1} parent=1 // pred_check_branch
      %61 = sbr.rel (0) target = $region21
    $region20: #{tpu_custom_call.1} parent=1 // pred_region
      %s63 = ssub.s32 32, 32
      %64 = vsyncadd [#allocation9], %s63
      %s66 = sshll.u32 [#allocation8], 4
      %s67 = int_to_ptr.vmem [resolvable:$true] %s66
      %69 = dma.hbm_to_vmem [thread:$0]  %s4, 32, %s67, [#allocation9]
    $region21: #{tpu_custom_call.1} parent=1 // pred_fallthru
      _
    // Predicated region
    $region22: #{tpu_custom_call.1} parent=1 // pred_check
      _
    $region23: #{tpu_custom_call.1} parent=1 // pred_check_branch
      %71 = sbr.rel (0) target = $region25
    $region24: #{tpu_custom_call.1} parent=1 // pred_region
      %s73 = ssub.s32 2048, 2048
      %74 = vsyncadd [#allocation9], %s73
      %s75 = sshll.u32 [#allocation10], 4
      %s76 = int_to_ptr.vmem [resolvable:$true] %s75
      %81 = dma.hbm_to_vmem [thread:$0]  %s5, 2048, %s76, [#allocation9], 128, 128, 8
    $region25: #{tpu_custom_call.1} parent=1 // pred_fallthru
      _
    // Predicated region
    $region26: #{tpu_custom_call.1} parent=1 // pred_check
      _
    $region27: #{tpu_custom_call.1} parent=1 // pred_check_branch
      %83 = sbr.rel (0) target = $region29
    $region28: #{tpu_custom_call.1} parent=1 // pred_region
      _
    $region29: #{tpu_custom_call.1} parent=1 // pred_fallthru
      _
    // Predicated region
    $region30: #{tpu_custom_call.1} parent=1 // pred_check
      _
    $region31: #{tpu_custom_call.1} parent=1 // pred_check_branch
      %85 = sbr.rel (0) target = $region33
    $region32: #{tpu_custom_call.1} parent=1 // pred_region
      %s87 = ssub.s32 16384, 16384
      %88 = vsyncadd [#allocation12], %s87
      %s89 = sshll.u32 [#allocation11], 4
      %s90 = int_to_ptr.vmem [resolvable:$true] %s89
      %95 = dma.hbm_to_vmem [thread:$0]  %s7, 16384, %s90, [#allocation12], 512, 512, 32
    $region33: #{tpu_custom_call.1} parent=1 // pred_fallthru
      _
    // Predicated region
    $region34: #{tpu_custom_call.1} parent=1 // pred_check
      _
    $region35: #{tpu_custom_call.1} parent=1 // pred_check_branch
      %97 = sbr.rel (0) target = $region37
    $region36: #{tpu_custom_call.1} parent=1 // pred_region
      _
    $region37: #{tpu_custom_call.1} parent=1 // pred_fallthru
      _
    // Predicated region
    $region38: #{tpu_custom_call.1} parent=1 // pred_check
      _
    $region39: #{tpu_custom_call.1} parent=1 // pred_check_branch
      %99 = sbr.rel (0) target = $region41
    $region40: #{tpu_custom_call.1} parent=1 // pred_region
      _
    $region41: #{tpu_custom_call.1} parent=1 // pred_fallthru
      _
    // Predicated region
    $region42: #{tpu_custom_call.1} parent=1 // pred_check
      _
    $region43: #{tpu_custom_call.1} parent=1 // pred_check_branch
      %101 = sbr.rel (0) target = $region45
    $region44: #{tpu_custom_call.1} parent=1 // pred_region
      %102 = dma.done [#allocation3], 1024
    $region45: #{tpu_custom_call.1} parent=1 // pred_fallthru
      _
    // Predicated region
    $region46: #{tpu_custom_call.1} parent=1 // pred_check
      _
    $region47: #{tpu_custom_call.1} parent=1 // pred_check_branch
      %104 = sbr.rel (0) target = $region49
    $region48: #{tpu_custom_call.1} parent=1 // pred_region
      %105 = dma.done [#allocation6], 16384
    $region49: #{tpu_custom_call.1} parent=1 // pred_fallthru
      _
    // Predicated region
    $region50: #{tpu_custom_call.1} parent=1 // pred_check
      _
    $region51: #{tpu_custom_call.1} parent=1 // pred_check_branch
      %107 = sbr.rel (0) target = $region53
    $region52: #{tpu_custom_call.1} parent=1 // pred_region
      %108 = dma.done [#allocation6], 4096
    $region53: #{tpu_custom_call.1} parent=1 // pred_fallthru
      _
    // Predicated region
    $region54: #{tpu_custom_call.1} parent=1 // pred_check
      _
    $region55: #{tpu_custom_call.1} parent=1 // pred_check_branch
      %110 = sbr.rel (0) target = $region57
    $region56: #{tpu_custom_call.1} parent=1 // pred_region
      %111 = dma.done [#allocation9], 32
    $region57: #{tpu_custom_call.1} parent=1 // pred_fallthru
      _
    // Predicated region
    $region58: #{tpu_custom_call.1} parent=1 // pred_check
      _
    $region59: #{tpu_custom_call.1} parent=1 // pred_check_branch
      %113 = sbr.rel (0) target = $region61
    $region60: #{tpu_custom_call.1} parent=1 // pred_region
      %114 = dma.done [#allocation9], 2048
    $region61: #{tpu_custom_call.1} parent=1 // pred_fallthru
      _
    // Predicated region
    $region62: #{tpu_custom_call.1} parent=1 // pred_check
      _
    $region63: #{tpu_custom_call.1} parent=1 // pred_check_branch
      %116 = sbr.rel (0) target = $region65
    $region64: #{tpu_custom_call.1} parent=1 // pred_region
      %117 = dma.done [#allocation12], 16384
    $region65: #{tpu_custom_call.1} parent=1 // pred_fallthru
      _
    %v119 = vld [vmem:[#allocation2] sm:$0xff]
    %v120 = vld [vmem:[#allocation2 + $0x8] sm:$0xff]
    %v121 = vld [vmem:[#allocation2 + $0x10] sm:$0xff]
    %v122 = vld [vmem:[#allocation2 + $0x18] sm:$0xff]
    %v123 = vld [vmem:[#allocation2 + $0x20] sm:$0xff]
    %v124 = vld [vmem:[#allocation2 + $0x28] sm:$0xff]
    %v125 = vld [vmem:[#allocation2 + $0x30] sm:$0xff]
    %v126 = vld [vmem:[#allocation2 + $0x38] sm:$0xff]
    %v127 = vpack.c.bf16 %v119, %v119
    %v128 = vpack.c.bf16 %v120, %v120
    %v129 = vpack.c.bf16 %v121, %v121
    %v130 = vpack.c.bf16 %v122, %v122
    %v131 = vpack.c.bf16 %v123, %v123
    %v132 = vpack.c.bf16 %v124, %v124
    %v133 = vpack.c.bf16 %v125, %v125
    %v134 = vpack.c.bf16 %v126, %v126
    %v135 = vld [vmem:[#allocation5] sm:$0xff]
    %v136 = vld [vmem:[#allocation5 + $0x8] sm:$0xff]
    %v137 = vld [vmem:[#allocation5 + $0x10] sm:$0xff]
    %v138 = vld [vmem:[#allocation5 + $0x18] sm:$0xff]
    %v139 = vld [vmem:[#allocation5 + $0x20] sm:$0xff]
    %v140 = vld [vmem:[#allocation5 + $0x28] sm:$0xff]
    %v141 = vld [vmem:[#allocation5 + $0x30] sm:$0xff]
    %v142 = vld [vmem:[#allocation5 + $0x38] sm:$0xff]
    %v143 = vld [vmem:[#allocation5 + $0x40] sm:$0xff]
    %v144 = vld [vmem:[#allocation5 + $0x48] sm:$0xff]
    %v145 = vld [vmem:[#allocation5 + $0x50] sm:$0xff]
    %v146 = vld [vmem:[#allocation5 + $0x58] sm:$0xff]
    %v147 = vld [vmem:[#allocation5 + $0x60] sm:$0xff]
    %v148 = vld [vmem:[#allocation5 + $0x68] sm:$0xff]
    %v149 = vld [vmem:[#allocation5 + $0x70] sm:$0xff]
    %v150 = vld [vmem:[#allocation5 + $0x78] sm:$0xff]
    %v151 = vld [vmem:[#allocation5 + $0x80] sm:$0xff]
    %v152 = vld [vmem:[#allocation5 + $0x88] sm:$0xff]
    %v153 = vld [vmem:[#allocation5 + $0x90] sm:$0xff]
    %v154 = vld [vmem:[#allocation5 + $0x98] sm:$0xff]
    %v155 = vld [vmem:[#allocation5 + $0xa0] sm:$0xff]
    %v156 = vld [vmem:[#allocation5 + $0xa8] sm:$0xff]
    %v157 = vld [vmem:[#allocation5 + $0xb0] sm:$0xff]
    %v158 = vld [vmem:[#allocation5 + $0xb8] sm:$0xff]
    %v159 = vld [vmem:[#allocation5 + $0xc0] sm:$0xff]
    %v160 = vld [vmem:[#allocation5 + $0xc8] sm:$0xff]
    %v161 = vld [vmem:[#allocation5 + $0xd0] sm:$0xff]
    %v162 = vld [vmem:[#allocation5 + $0xd8] sm:$0xff]
    %v163 = vld [vmem:[#allocation5 + $0xe0] sm:$0xff]
    %v164 = vld [vmem:[#allocation5 + $0xe8] sm:$0xff]
    %v165 = vld [vmem:[#allocation5 + $0xf0] sm:$0xff]
    %v166 = vld [vmem:[#allocation5 + $0xf8] sm:$0xff]
    %v167 = vld [vmem:[#allocation5 + $0x100] sm:$0xff]
    %v168 = vld [vmem:[#allocation5 + $0x108] sm:$0xff]
    %v169 = vld [vmem:[#allocation5 + $0x110] sm:$0xff]
    %v170 = vld [vmem:[#allocation5 + $0x118] sm:$0xff]
    %v171 = vld [vmem:[#allocation5 + $0x120] sm:$0xff]
    %v172 = vld [vmem:[#allocation5 + $0x128] sm:$0xff]
    %v173 = vld [vmem:[#allocation5 + $0x130] sm:$0xff]
    %v174 = vld [vmem:[#allocation5 + $0x138] sm:$0xff]
    %v175 = vld [vmem:[#allocation5 + $0x140] sm:$0xff]
    %v176 = vld [vmem:[#allocation5 + $0x148] sm:$0xff]
    %v177 = vld [vmem:[#allocation5 + $0x150] sm:$0xff]
    %v178 = vld [vmem:[#allocation5 + $0x158] sm:$0xff]
    %v179 = vld [vmem:[#allocation5 + $0x160] sm:$0xff]
    %v180 = vld [vmem:[#allocation5 + $0x168] sm:$0xff]
    %v181 = vld [vmem:[#allocation5 + $0x170] sm:$0xff]
    %v182 = vld [vmem:[#allocation5 + $0x178] sm:$0xff]
    %v183 = vld [vmem:[#allocation5 + $0x180] sm:$0xff]
    %v184 = vld [vmem:[#allocation5 + $0x188] sm:$0xff]
    %v185 = vld [vmem:[#allocation5 + $0x190] sm:$0xff]
    %v186 = vld [vmem:[#allocation5 + $0x198] sm:$0xff]
    %v187 = vld [vmem:[#allocation5 + $0x1a0] sm:$0xff]
    %v188 = vld [vmem:[#allocation5 + $0x1a8] sm:$0xff]
    %v189 = vld [vmem:[#allocation5 + $0x1b0] sm:$0xff]
    %v190 = vld [vmem:[#allocation5 + $0x1b8] sm:$0xff]
    %v191 = vld [vmem:[#allocation5 + $0x1c0] sm:$0xff]
    %v192 = vld [vmem:[#allocation5 + $0x1c8] sm:$0xff]
    %v193 = vld [vmem:[#allocation5 + $0x1d0] sm:$0xff]
    %v194 = vld [vmem:[#allocation5 + $0x1d8] sm:$0xff]
    %v195 = vld [vmem:[#allocation5 + $0x1e0] sm:$0xff]
    %v196 = vld [vmem:[#allocation5 + $0x1e8] sm:$0xff]
    %v197 = vld [vmem:[#allocation5 + $0x1f0] sm:$0xff]
    %v198 = vld [vmem:[#allocation5 + $0x1f8] sm:$0xff]
    %v199 = vld [vmem:[#allocation5 + $0x200] sm:$0xff]
    %v200 = vld [vmem:[#allocation5 + $0x208] sm:$0xff]
    %v201 = vld [vmem:[#allocation5 + $0x210] sm:$0xff]
    %v202 = vld [vmem:[#allocation5 + $0x218] sm:$0xff]
    %v203 = vld [vmem:[#allocation5 + $0x220] sm:$0xff]
    %v204 = vld [vmem:[#allocation5 + $0x228] sm:$0xff]
    %v205 = vld [vmem:[#allocation5 + $0x230] sm:$0xff]
    %v206 = vld [vmem:[#allocation5 + $0x238] sm:$0xff]
    %v207 = vld [vmem:[#allocation5 + $0x240] sm:$0xff]
    %v208 = vld [vmem:[#allocation5 + $0x248] sm:$0xff]
    %v209 = vld [vmem:[#allocation5 + $0x250] sm:$0xff]
    %v210 = vld [vmem:[#allocation5 + $0x258] sm:$0xff]
    %v211 = vld [vmem:[#allocation5 + $0x260] sm:$0xff]
    %v212 = vld [vmem:[#allocation5 + $0x268] sm:$0xff]
    %v213 = vld [vmem:[#allocation5 + $0x270] sm:$0xff]
    %v214 = vld [vmem:[#allocation5 + $0x278] sm:$0xff]
    %v215 = vld [vmem:[#allocation5 + $0x280] sm:$0xff]
    %v216 = vld [vmem:[#allocation5 + $0x288] sm:$0xff]
    %v217 = vld [vmem:[#allocation5 + $0x290] sm:$0xff]
    %v218 = vld [vmem:[#allocation5 + $0x298] sm:$0xff]
    %v219 = vld [vmem:[#allocation5 + $0x2a0] sm:$0xff]
    %v220 = vld [vmem:[#allocation5 + $0x2a8] sm:$0xff]
    %v221 = vld [vmem:[#allocation5 + $0x2b0] sm:$0xff]
    %v222 = vld [vmem:[#allocation5 + $0x2b8] sm:$0xff]
    %v223 = vld [vmem:[#allocation5 + $0x2c0] sm:$0xff]
    %v224 = vld [vmem:[#allocation5 + $0x2c8] sm:$0xff]
    %v225 = vld [vmem:[#allocation5 + $0x2d0] sm:$0xff]
    %v226 = vld [vmem:[#allocation5 + $0x2d8] sm:$0xff]
    %v227 = vld [vmem:[#allocation5 + $0x2e0] sm:$0xff]
    %v228 = vld [vmem:[#allocation5 + $0x2e8] sm:$0xff]
    %v229 = vld [vmem:[#allocation5 + $0x2f0] sm:$0xff]
    %v230 = vld [vmem:[#allocation5 + $0x2f8] sm:$0xff]
    %v231 = vld [vmem:[#allocation5 + $0x300] sm:$0xff]
    %v232 = vld [vmem:[#allocation5 + $0x308] sm:$0xff]
    %v233 = vld [vmem:[#allocation5 + $0x310] sm:$0xff]
    %v234 = vld [vmem:[#allocation5 + $0x318] sm:$0xff]
    %v235 = vld [vmem:[#allocation5 + $0x320] sm:$0xff]
    %v236 = vld [vmem:[#allocation5 + $0x328] sm:$0xff]
    %v237 = vld [vmem:[#allocation5 + $0x330] sm:$0xff]
    %v238 = vld [vmem:[#allocation5 + $0x338] sm:$0xff]
    %v239 = vld [vmem:[#allocation5 + $0x340] sm:$0xff]
    %v240 = vld [vmem:[#allocation5 + $0x348] sm:$0xff]
    %v241 = vld [vmem:[#allocation5 + $0x350] sm:$0xff]
    %v242 = vld [vmem:[#allocation5 + $0x358] sm:$0xff]
    %v243 = vld [vmem:[#allocation5 + $0x360] sm:$0xff]
    %v244 = vld [vmem:[#allocation5 + $0x368] sm:$0xff]
    %v245 = vld [vmem:[#allocation5 + $0x370] sm:$0xff]
    %v246 = vld [vmem:[#allocation5 + $0x378] sm:$0xff]
    %v247 = vld [vmem:[#allocation5 + $0x380] sm:$0xff]
    %v248 = vld [vmem:[#allocation5 + $0x388] sm:$0xff]
    %v249 = vld [vmem:[#allocation5 + $0x390] sm:$0xff]
    %v250 = vld [vmem:[#allocation5 + $0x398] sm:$0xff]
    %v251 = vld [vmem:[#allocation5 + $0x3a0] sm:$0xff]
    %v252 = vld [vmem:[#allocation5 + $0x3a8] sm:$0xff]
    %v253 = vld [vmem:[#allocation5 + $0x3b0] sm:$0xff]
    %v254 = vld [vmem:[#allocation5 + $0x3b8] sm:$0xff]
    %v255 = vld [vmem:[#allocation5 + $0x3c0] sm:$0xff]
    %v256 = vld [vmem:[#allocation5 + $0x3c8] sm:$0xff]
    %v257 = vld [vmem:[#allocation5 + $0x3d0] sm:$0xff]
    %v258 = vld [vmem:[#allocation5 + $0x3d8] sm:$0xff]
    %v259 = vld [vmem:[#allocation5 + $0x3e0] sm:$0xff]
    %v260 = vld [vmem:[#allocation5 + $0x3e8] sm:$0xff]
    %v261 = vld [vmem:[#allocation5 + $0x3f0] sm:$0xff]
    %v262 = vld [vmem:[#allocation5 + $0x3f8] sm:$0xff]
    %v263 = vld [vmem:[%s2] sm:$0x3]
    %v265 = vlaneseq
    %v266 = vshrl.u32 %v265, 7
    %v267 = vsub.s32 0, %v266
    %v268 = vrot.slane %v263, %v267
    %v269 = vlaneseq
    %v270 = vshrl.u32 %v269, 7
    %v271 = vsub.s32 1, %v270
    %v272 = vrot.slane %v263, %v271
    %v403 = vunpack.c.l.b16 %v135
    %v404 = vunpack.c.h.b16 %v135
    %v405 = vunpack.c.l.b16 %v136
    %v406 = vunpack.c.h.b16 %v136
    %v407 = vunpack.c.l.b16 %v137
    %v408 = vunpack.c.h.b16 %v137
    %v409 = vunpack.c.l.b16 %v138
    %v410 = vunpack.c.h.b16 %v138
    %v411 = vunpack.c.l.b16 %v139
    %v412 = vunpack.c.h.b16 %v139
    %v413 = vunpack.c.l.b16 %v140
    %v414 = vunpack.c.h.b16 %v140
    %v415 = vunpack.c.l.b16 %v141
    %v416 = vunpack.c.h.b16 %v141
    %v417 = vunpack.c.l.b16 %v142
    %v418 = vunpack.c.h.b16 %v142
    %v419 = vunpack.c.l.b16 %v143
    %v420 = vunpack.c.h.b16 %v143
    %v421 = vunpack.c.l.b16 %v144
    %v422 = vunpack.c.h.b16 %v144
    %v423 = vunpack.c.l.b16 %v145
    %v424 = vunpack.c.h.b16 %v145
    %v425 = vunpack.c.l.b16 %v146
    %v426 = vunpack.c.h.b16 %v146
    %v427 = vunpack.c.l.b16 %v147
    %v428 = vunpack.c.h.b16 %v147
    %v429 = vunpack.c.l.b16 %v148
    %v430 = vunpack.c.h.b16 %v148
    %v431 = vunpack.c.l.b16 %v149
    %v432 = vunpack.c.h.b16 %v149
    %v433 = vunpack.c.l.b16 %v150
    %v434 = vunpack.c.h.b16 %v150
    %v435 = vunpack.c.l.b16 %v151
    %v436 = vunpack.c.h.b16 %v151
    %v437 = vunpack.c.l.b16 %v152
    %v438 = vunpack.c.h.b16 %v152
    %v439 = vunpack.c.l.b16 %v153
    %v440 = vunpack.c.h.b16 %v153
    %v441 = vunpack.c.l.b16 %v154
    %v442 = vunpack.c.h.b16 %v154
    %v443 = vunpack.c.l.b16 %v155
    %v444 = vunpack.c.h.b16 %v155
    %v445 = vunpack.c.l.b16 %v156
    %v446 = vunpack.c.h.b16 %v156
    %v447 = vunpack.c.l.b16 %v157
    %v448 = vunpack.c.h.b16 %v157
    %v449 = vunpack.c.l.b16 %v158
    %v450 = vunpack.c.h.b16 %v158
    %v451 = vunpack.c.l.b16 %v159
    %v452 = vunpack.c.h.b16 %v159
    %v453 = vunpack.c.l.b16 %v160
    %v454 = vunpack.c.h.b16 %v160
    %v455 = vunpack.c.l.b16 %v161
    %v456 = vunpack.c.h.b16 %v161
    %v457 = vunpack.c.l.b16 %v162
    %v458 = vunpack.c.h.b16 %v162
    %v459 = vunpack.c.l.b16 %v163
    %v460 = vunpack.c.h.b16 %v163
    %v461 = vunpack.c.l.b16 %v164
    %v462 = vunpack.c.h.b16 %v164
    %v463 = vunpack.c.l.b16 %v165
    %v464 = vunpack.c.h.b16 %v165
    %v465 = vunpack.c.l.b16 %v166
    %v466 = vunpack.c.h.b16 %v166
    %v467 = vunpack.c.l.b16 %v167
    %v468 = vunpack.c.h.b16 %v167
    %v469 = vunpack.c.l.b16 %v168
    %v470 = vunpack.c.h.b16 %v168
    %v471 = vunpack.c.l.b16 %v169
    %v472 = vunpack.c.h.b16 %v169
    %v473 = vunpack.c.l.b16 %v170
    %v474 = vunpack.c.h.b16 %v170
    %v475 = vunpack.c.l.b16 %v171
    %v476 = vunpack.c.h.b16 %v171
    %v477 = vunpack.c.l.b16 %v172
    %v478 = vunpack.c.h.b16 %v172
    %v479 = vunpack.c.l.b16 %v173
    %v480 = vunpack.c.h.b16 %v173
    %v481 = vunpack.c.l.b16 %v174
    %v482 = vunpack.c.h.b16 %v174
    %v483 = vunpack.c.l.b16 %v175
    %v484 = vunpack.c.h.b16 %v175
    %v485 = vunpack.c.l.b16 %v176
    %v486 = vunpack.c.h.b16 %v176
    %v487 = vunpack.c.l.b16 %v177
    %v488 = vunpack.c.h.b16 %v177
    %v489 = vunpack.c.l.b16 %v178
    %v490 = vunpack.c.h.b16 %v178
    %v491 = vunpack.c.l.b16 %v179
    %v492 = vunpack.c.h.b16 %v179
    %v493 = vunpack.c.l.b16 %v180
    %v494 = vunpack.c.h.b16 %v180
    %v495 = vunpack.c.l.b16 %v181
    %v496 = vunpack.c.h.b16 %v181
    %v497 = vunpack.c.l.b16 %v182
    %v498 = vunpack.c.h.b16 %v182
    %v499 = vunpack.c.l.b16 %v183
    %v500 = vunpack.c.h.b16 %v183
    %v501 = vunpack.c.l.b16 %v184
    %v502 = vunpack.c.h.b16 %v184
    %v503 = vunpack.c.l.b16 %v185
    %v504 = vunpack.c.h.b16 %v185
    %v505 = vunpack.c.l.b16 %v186
    %v506 = vunpack.c.h.b16 %v186
    %v507 = vunpack.c.l.b16 %v187
    %v508 = vunpack.c.h.b16 %v187
    %v509 = vunpack.c.l.b16 %v188
    %v510 = vunpack.c.h.b16 %v188
    %v511 = vunpack.c.l.b16 %v189
    %v512 = vunpack.c.h.b16 %v189
    %v513 = vunpack.c.l.b16 %v190
    %v514 = vunpack.c.h.b16 %v190
    %v515 = vunpack.c.l.b16 %v191
    %v516 = vunpack.c.h.b16 %v191
    %v517 = vunpack.c.l.b16 %v192
    %v518 = vunpack.c.h.b16 %v192
    %v519 = vunpack.c.l.b16 %v193
    %v520 = vunpack.c.h.b16 %v193
    %v521 = vunpack.c.l.b16 %v194
    %v522 = vunpack.c.h.b16 %v194
    %v523 = vunpack.c.l.b16 %v195
    %v524 = vunpack.c.h.b16 %v195
    %v525 = vunpack.c.l.b16 %v196
    %v526 = vunpack.c.h.b16 %v196
    %v527 = vunpack.c.l.b16 %v197
    %v528 = vunpack.c.h.b16 %v197
    %v529 = vunpack.c.l.b16 %v198
    %v530 = vunpack.c.h.b16 %v198
    %v531 = vunpack.c.l.b16 %v199
    %v532 = vunpack.c.h.b16 %v199
    %v533 = vunpack.c.l.b16 %v200
    %v534 = vunpack.c.h.b16 %v200
    %v535 = vunpack.c.l.b16 %v201
    %v536 = vunpack.c.h.b16 %v201
    %v537 = vunpack.c.l.b16 %v202
    %v538 = vunpack.c.h.b16 %v202
    %v539 = vunpack.c.l.b16 %v203
    %v540 = vunpack.c.h.b16 %v203
    %v541 = vunpack.c.l.b16 %v204
    %v542 = vunpack.c.h.b16 %v204
    %v543 = vunpack.c.l.b16 %v205
    %v544 = vunpack.c.h.b16 %v205
    %v545 = vunpack.c.l.b16 %v206
    %v546 = vunpack.c.h.b16 %v206
    %v547 = vunpack.c.l.b16 %v207
    %v548 = vunpack.c.h.b16 %v207
    %v549 = vunpack.c.l.b16 %v208
    %v550 = vunpack.c.h.b16 %v208
    %v551 = vunpack.c.l.b16 %v209
    %v552 = vunpack.c.h.b16 %v209
    %v553 = vunpack.c.l.b16 %v210
    %v554 = vunpack.c.h.b16 %v210
    %v555 = vunpack.c.l.b16 %v211
    %v556 = vunpack.c.h.b16 %v211
    %v557 = vunpack.c.l.b16 %v212
    %v558 = vunpack.c.h.b16 %v212
    %v559 = vunpack.c.l.b16 %v213
    %v560 = vunpack.c.h.b16 %v213
    %v561 = vunpack.c.l.b16 %v214
    %v562 = vunpack.c.h.b16 %v214
    %v563 = vunpack.c.l.b16 %v215
    %v564 = vunpack.c.h.b16 %v215
    %v565 = vunpack.c.l.b16 %v216
    %v566 = vunpack.c.h.b16 %v216
    %v567 = vunpack.c.l.b16 %v217
    %v568 = vunpack.c.h.b16 %v217
    %v569 = vunpack.c.l.b16 %v218
    %v570 = vunpack.c.h.b16 %v218
    %v571 = vunpack.c.l.b16 %v219
    %v572 = vunpack.c.h.b16 %v219
    %v573 = vunpack.c.l.b16 %v220
    %v574 = vunpack.c.h.b16 %v220
    %v575 = vunpack.c.l.b16 %v221
    %v576 = vunpack.c.h.b16 %v221
    %v577 = vunpack.c.l.b16 %v222
    %v578 = vunpack.c.h.b16 %v222
    %v579 = vunpack.c.l.b16 %v223
    %v580 = vunpack.c.h.b16 %v223
    %v581 = vunpack.c.l.b16 %v224
    %v582 = vunpack.c.h.b16 %v224
    %v583 = vunpack.c.l.b16 %v225
    %v584 = vunpack.c.h.b16 %v225
    %v585 = vunpack.c.l.b16 %v226
    %v586 = vunpack.c.h.b16 %v226
    %v587 = vunpack.c.l.b16 %v227
    %v588 = vunpack.c.h.b16 %v227
    %v589 = vunpack.c.l.b16 %v228
    %v590 = vunpack.c.h.b16 %v228
    %v591 = vunpack.c.l.b16 %v229
    %v592 = vunpack.c.h.b16 %v229
    %v593 = vunpack.c.l.b16 %v230
    %v594 = vunpack.c.h.b16 %v230
    %v595 = vunpack.c.l.b16 %v231
    %v596 = vunpack.c.h.b16 %v231
    %v597 = vunpack.c.l.b16 %v232
    %v598 = vunpack.c.h.b16 %v232
    %v599 = vunpack.c.l.b16 %v233
    %v600 = vunpack.c.h.b16 %v233
    %v601 = vunpack.c.l.b16 %v234
    %v602 = vunpack.c.h.b16 %v234
    %v603 = vunpack.c.l.b16 %v235
    %v604 = vunpack.c.h.b16 %v235
    %v605 = vunpack.c.l.b16 %v236
    %v606 = vunpack.c.h.b16 %v236
    %v607 = vunpack.c.l.b16 %v237
    %v608 = vunpack.c.h.b16 %v237
    %v609 = vunpack.c.l.b16 %v238
    %v610 = vunpack.c.h.b16 %v238
    %v611 = vunpack.c.l.b16 %v239
    %v612 = vunpack.c.h.b16 %v239
    %v613 = vunpack.c.l.b16 %v240
    %v614 = vunpack.c.h.b16 %v240
    %v615 = vunpack.c.l.b16 %v241
    %v616 = vunpack.c.h.b16 %v241
    %v617 = vunpack.c.l.b16 %v242
    %v618 = vunpack.c.h.b16 %v242
    %v619 = vunpack.c.l.b16 %v243
    %v620 = vunpack.c.h.b16 %v243
    %v621 = vunpack.c.l.b16 %v244
    %v622 = vunpack.c.h.b16 %v244
    %v623 = vunpack.c.l.b16 %v245
    %v624 = vunpack.c.h.b16 %v245
    %v625 = vunpack.c.l.b16 %v246
    %v626 = vunpack.c.h.b16 %v246
    %v627 = vunpack.c.l.b16 %v247
    %v628 = vunpack.c.h.b16 %v247
    %v629 = vunpack.c.l.b16 %v248
    %v630 = vunpack.c.h.b16 %v248
    %v631 = vunpack.c.l.b16 %v249
    %v632 = vunpack.c.h.b16 %v249
    %v633 = vunpack.c.l.b16 %v250
    %v634 = vunpack.c.h.b16 %v250
    %v635 = vunpack.c.l.b16 %v251
    %v636 = vunpack.c.h.b16 %v251
    %v637 = vunpack.c.l.b16 %v252
    %v638 = vunpack.c.h.b16 %v252
    %v639 = vunpack.c.l.b16 %v253
    %v640 = vunpack.c.h.b16 %v253
    %v641 = vunpack.c.l.b16 %v254
    %v642 = vunpack.c.h.b16 %v254
    %v643 = vunpack.c.l.b16 %v255
    %v644 = vunpack.c.h.b16 %v255
    %v645 = vunpack.c.l.b16 %v256
    %v646 = vunpack.c.h.b16 %v256
    %v647 = vunpack.c.l.b16 %v257
    %v648 = vunpack.c.h.b16 %v257
    %v649 = vunpack.c.l.b16 %v258
    %v650 = vunpack.c.h.b16 %v258
    %v651 = vunpack.c.l.b16 %v259
    %v652 = vunpack.c.h.b16 %v259
    %v653 = vunpack.c.l.b16 %v260
    %v654 = vunpack.c.h.b16 %v260
    %v655 = vunpack.c.l.b16 %v261
    %v656 = vunpack.c.h.b16 %v261
    %v657 = vunpack.c.l.b16 %v262
    %v658 = vunpack.c.h.b16 %v262
    %v659 = vpack.c.b16 %v405, %v403
    %v660 = vpack.c.b16 %v406, %v404
    %v661 = vpack.c.b16 %v409, %v407
    %v662 = vpack.c.b16 %v410, %v408
    %v663 = vpack.c.b16 %v413, %v411
    %v664 = vpack.c.b16 %v414, %v412
    %v665 = vpack.c.b16 %v417, %v415
    %v666 = vpack.c.b16 %v418, %v416
    %v667 = vpack.c.b16 %v421, %v419
    %v668 = vpack.c.b16 %v422, %v420
    %v669 = vpack.c.b16 %v425, %v423
    %v670 = vpack.c.b16 %v426, %v424
    %v671 = vpack.c.b16 %v429, %v427
    %v672 = vpack.c.b16 %v430, %v428
    %v673 = vpack.c.b16 %v433, %v431
    %v674 = vpack.c.b16 %v434, %v432
    %v675 = vpack.c.b16 %v437, %v435
    %v676 = vpack.c.b16 %v438, %v436
    %v677 = vpack.c.b16 %v441, %v439
    %v678 = vpack.c.b16 %v442, %v440
    %v679 = vpack.c.b16 %v445, %v443
    %v680 = vpack.c.b16 %v446, %v444
    %v681 = vpack.c.b16 %v449, %v447
    %v682 = vpack.c.b16 %v450, %v448
    %v683 = vpack.c.b16 %v453, %v451
    %v684 = vpack.c.b16 %v454, %v452
    %v685 = vpack.c.b16 %v457, %v455
    %v686 = vpack.c.b16 %v458, %v456
    %v687 = vpack.c.b16 %v461, %v459
    %v688 = vpack.c.b16 %v462, %v460
    %v689 = vpack.c.b16 %v465, %v463
    %v690 = vpack.c.b16 %v466, %v464
    %v691 = vpack.c.b16 %v469, %v467
    %v692 = vpack.c.b16 %v470, %v468
    %v693 = vpack.c.b16 %v473, %v471
    %v694 = vpack.c.b16 %v474, %v472
    %v695 = vpack.c.b16 %v477, %v475
    %v696 = vpack.c.b16 %v478, %v476
    %v697 = vpack.c.b16 %v481, %v479
    %v698 = vpack.c.b16 %v482, %v480
    %v699 = vpack.c.b16 %v485, %v483
    %v700 = vpack.c.b16 %v486, %v484
    %v701 = vpack.c.b16 %v489, %v487
    %v702 = vpack.c.b16 %v490, %v488
    %v703 = vpack.c.b16 %v493, %v491
    %v704 = vpack.c.b16 %v494, %v492
    %v705 = vpack.c.b16 %v497, %v495
    %v706 = vpack.c.b16 %v498, %v496
    %v707 = vpack.c.b16 %v501, %v499
    %v708 = vpack.c.b16 %v502, %v500
    %v709 = vpack.c.b16 %v505, %v503
    %v710 = vpack.c.b16 %v506, %v504
    %v711 = vpack.c.b16 %v509, %v507
    %v712 = vpack.c.b16 %v510, %v508
    %v713 = vpack.c.b16 %v513, %v511
    %v714 = vpack.c.b16 %v514, %v512
    %v715 = vpack.c.b16 %v517, %v515
    %v716 = vpack.c.b16 %v518, %v516
    %v717 = vpack.c.b16 %v521, %v519
    %v718 = vpack.c.b16 %v522, %v520
    %v719 = vpack.c.b16 %v525, %v523
    %v720 = vpack.c.b16 %v526, %v524
    %v721 = vpack.c.b16 %v529, %v527
    %v722 = vpack.c.b16 %v530, %v528
    %v723 = vpack.c.b16 %v533, %v531
    %v724 = vpack.c.b16 %v534, %v532
    %v725 = vpack.c.b16 %v537, %v535
    %v726 = vpack.c.b16 %v538, %v536
    %v727 = vpack.c.b16 %v541, %v539
    %v728 = vpack.c.b16 %v542, %v540
    %v729 = vpack.c.b16 %v545, %v543
    %v730 = vpack.c.b16 %v546, %v544
    %v731 = vpack.c.b16 %v549, %v547
    %v732 = vpack.c.b16 %v550, %v548
    %v733 = vpack.c.b16 %v553, %v551
    %v734 = vpack.c.b16 %v554, %v552
    %v735 = vpack.c.b16 %v557, %v555
    %v736 = vpack.c.b16 %v558, %v556
    %v737 = vpack.c.b16 %v561, %v559
    %v738 = vpack.c.b16 %v562, %v560
    %v739 = vpack.c.b16 %v565, %v563
    %v740 = vpack.c.b16 %v566, %v564
    %v741 = vpack.c.b16 %v569, %v567
    %v742 = vpack.c.b16 %v570, %v568
    %v743 = vpack.c.b16 %v573, %v571
    %v744 = vpack.c.b16 %v574, %v572
    %v745 = vpack.c.b16 %v577, %v575
    %v746 = vpack.c.b16 %v578, %v576
    %v747 = vpack.c.b16 %v581, %v579
    %v748 = vpack.c.b16 %v582, %v580
    %v749 = vpack.c.b16 %v585, %v583
    %v750 = vpack.c.b16 %v586, %v584
    %v751 = vpack.c.b16 %v589, %v587
    %v752 = vpack.c.b16 %v590, %v588
    %v753 = vpack.c.b16 %v593, %v591
    %v754 = vpack.c.b16 %v594, %v592
    %v755 = vpack.c.b16 %v597, %v595
    %v756 = vpack.c.b16 %v598, %v596
    %v757 = vpack.c.b16 %v601, %v599
    %v758 = vpack.c.b16 %v602, %v600
    %v759 = vpack.c.b16 %v605, %v603
    %v760 = vpack.c.b16 %v606, %v604
    %v761 = vpack.c.b16 %v609, %v607
    %v762 = vpack.c.b16 %v610, %v608
    %v763 = vpack.c.b16 %v613, %v611
    %v764 = vpack.c.b16 %v614, %v612
    %v765 = vpack.c.b16 %v617, %v615
    %v766 = vpack.c.b16 %v618, %v616
    %v767 = vpack.c.b16 %v621, %v619
    %v768 = vpack.c.b16 %v622, %v620
    %v769 = vpack.c.b16 %v625, %v623
    %v770 = vpack.c.b16 %v626, %v624
    %v771 = vpack.c.b16 %v629, %v627
    %v772 = vpack.c.b16 %v630, %v628
    %v773 = vpack.c.b16 %v633, %v631
    %v774 = vpack.c.b16 %v634, %v632
    %v775 = vpack.c.b16 %v637, %v635
    %v776 = vpack.c.b16 %v638, %v636
    %v777 = vpack.c.b16 %v641, %v639
    %v778 = vpack.c.b16 %v642, %v640
    %v779 = vpack.c.b16 %v645, %v643
    %v780 = vpack.c.b16 %v646, %v644
    %v781 = vpack.c.b16 %v649, %v647
    %v782 = vpack.c.b16 %v650, %v648
    %v783 = vpack.c.b16 %v653, %v651
    %v784 = vpack.c.b16 %v654, %v652
    %v785 = vpack.c.b16 %v657, %v655
    %v786 = vpack.c.b16 %v658, %v656
    %915 = vmatprep.subr.bf16.mxu0 %v660
    %916 = vmatpush1.bf16.msra.mxu0 %v659
    %917 = vmatprep.subr.bf16.mxu0 %v662
    %918 = vmatpush1.bf16.msra.mxu0 %v661
    %919 = vmatprep.subr.bf16.mxu0 %v664
    %920 = vmatpush1.bf16.msra.mxu0 %v663
    %921 = vmatprep.subr.bf16.mxu0 %v666
    %922 = vmatpush1.bf16.msra.mxu0 %v665
    %923 = vmatprep.subr.bf16.mxu0 %v668
    %924 = vmatpush1.bf16.msra.mxu0 %v667
    %925 = vmatprep.subr.bf16.mxu0 %v670
    %926 = vmatpush1.bf16.msra.mxu0 %v669
    %927 = vmatprep.subr.bf16.mxu0 %v672
    %928 = vmatpush1.bf16.msra.mxu0 %v671
    %929 = vmatprep.subr.bf16.mxu0 %v674
    %930 = vmatpush1.bf16.msra.mxu0 %v673
    %931 = vmatprep.subr.bf16.mxu0 %v676
    %932 = vmatpush1.bf16.msra.mxu0 %v675
    %933 = vmatprep.subr.bf16.mxu0 %v678
    %934 = vmatpush1.bf16.msra.mxu0 %v677
    %935 = vmatprep.subr.bf16.mxu0 %v680
    %936 = vmatpush1.bf16.msra.mxu0 %v679
    %937 = vmatprep.subr.bf16.mxu0 %v682
    %938 = vmatpush1.bf16.msra.mxu0 %v681
    %939 = vmatprep.subr.bf16.mxu0 %v684
    %940 = vmatpush1.bf16.msra.mxu0 %v683
    %941 = vmatprep.subr.bf16.mxu0 %v686
    %942 = vmatpush1.bf16.msra.mxu0 %v685
    %943 = vmatprep.subr.bf16.mxu0 %v688
    %944 = vmatpush1.bf16.msra.mxu0 %v687
    %945 = vmatprep.subr.bf16.mxu0 %v690
    %946 = vmatpush1.bf16.msra.mxu0 %v689
    %947 = vmatprep.mubr.bf16.mxu0 %v128
    %948 = vmatmul.mubr.bf16.gmra.mrb[0].mxu0 %v127
    %v949 = vpop.f32.mrb[0].mxu0
    %v950 = vadd.f32 %v268, %v949
    %v951 = vpop.f32.mrb[0].mxu0
    %v952 = vadd.f32 %v272, %v951
    %v953 = vpop.f32.mrb[0].mxu0
    %v954 = vpop.f32.mrb[0].mxu0
    %955 = vdwg.mxu0
    %956 = vmatprep.subr.bf16.mxu0 %v692
    %957 = vmatpush1.bf16.msra.mxu0 %v691
    %958 = vmatprep.subr.bf16.mxu0 %v694
    %959 = vmatpush1.bf16.msra.mxu0 %v693
    %960 = vmatprep.subr.bf16.mxu0 %v696
    %961 = vmatpush1.bf16.msra.mxu0 %v695
    %962 = vmatprep.subr.bf16.mxu0 %v698
    %963 = vmatpush1.bf16.msra.mxu0 %v697
    %964 = vmatprep.subr.bf16.mxu0 %v700
    %965 = vmatpush1.bf16.msra.mxu0 %v699
    %966 = vmatprep.subr.bf16.mxu0 %v702
    %967 = vmatpush1.bf16.msra.mxu0 %v701
    %968 = vmatprep.subr.bf16.mxu0 %v704
    %969 = vmatpush1.bf16.msra.mxu0 %v703
    %970 = vmatprep.subr.bf16.mxu0 %v706
    %971 = vmatpush1.bf16.msra.mxu0 %v705
    %972 = vmatprep.subr.bf16.mxu0 %v708
    %973 = vmatpush1.bf16.msra.mxu0 %v707
    %974 = vmatprep.subr.bf16.mxu0 %v710
    %975 = vmatpush1.bf16.msra.mxu0 %v709
    %976 = vmatprep.subr.bf16.mxu0 %v712
    %977 = vmatpush1.bf16.msra.mxu0 %v711
    %978 = vmatprep.subr.bf16.mxu0 %v714
    %979 = vmatpush1.bf16.msra.mxu0 %v713
    %980 = vmatprep.subr.bf16.mxu0 %v716
    %981 = vmatpush1.bf16.msra.mxu0 %v715
    %982 = vmatprep.subr.bf16.mxu0 %v718
    %983 = vmatpush1.bf16.msra.mxu0 %v717
    %984 = vmatprep.subr.bf16.mxu0 %v720
    %985 = vmatpush1.bf16.msra.mxu0 %v719
    %986 = vmatprep.subr.bf16.mxu0 %v722
    %987 = vmatpush1.bf16.msra.mxu0 %v721
    %988 = vmatprep.mubr.bf16.mxu0 %v130
    %989 = vmatmul.mubr.bf16.gmra.mrb[0].mxu0 %v129
    %v990 = vpop.f32.mrb[0].mxu0
    %v991 = vadd.f32 %v950, %v990
    %v992 = vpop.f32.mrb[0].mxu0
    %v993 = vadd.f32 %v952, %v992
    %v994 = vpop.f32.mrb[0].mxu0
    %v995 = vpop.f32.mrb[0].mxu0
    %996 = vdwg.mxu0
    %997 = vmatprep.subr.bf16.mxu0 %v724
    %998 = vmatpush1.bf16.msra.mxu0 %v723
    %999 = vmatprep.subr.bf16.mxu0 %v726
    %1000 = vmatpush1.bf16.msra.mxu0 %v725
    %1001 = vmatprep.subr.bf16.mxu0 %v728
    %1002 = vmatpush1.bf16.msra.mxu0 %v727
    %1003 = vmatprep.subr.bf16.mxu0 %v730
    %1004 = vmatpush1.bf16.msra.mxu0 %v729
    %1005 = vmatprep.subr.bf16.mxu0 %v732
    %1006 = vmatpush1.bf16.msra.mxu0 %v731
    %1007 = vmatprep.subr.bf16.mxu0 %v734
    %1008 = vmatpush1.bf16.msra.mxu0 %v733
    %1009 = vmatprep.subr.bf16.mxu0 %v736
    %1010 = vmatpush1.bf16.msra.mxu0 %v735
    %1011 = vmatprep.subr.bf16.mxu0 %v738
    %1012 = vmatpush1.bf16.msra.mxu0 %v737
    %1013 = vmatprep.subr.bf16.mxu0 %v740
    %1014 = vmatpush1.bf16.msra.mxu0 %v739
    %1015 = vmatprep.subr.bf16.mxu0 %v742
    %1016 = vmatpush1.bf16.msra.mxu0 %v741
    %1017 = vmatprep.subr.bf16.mxu0 %v744
    %1018 = vmatpush1.bf16.msra.mxu0 %v743
    %1019 = vmatprep.subr.bf16.mxu0 %v746
    %1020 = vmatpush1.bf16.msra.mxu0 %v745
    %1021 = vmatprep.subr.bf16.mxu0 %v748
    %1022 = vmatpush1.bf16.msra.mxu0 %v747
    %1023 = vmatprep.subr.bf16.mxu0 %v750
    %1024 = vmatpush1.bf16.msra.mxu0 %v749
    %1025 = vmatprep.subr.bf16.mxu0 %v752
    %1026 = vmatpush1.bf16.msra.mxu0 %v751
    %1027 = vmatprep.subr.bf16.mxu0 %v754
    %1028 = vmatpush1.bf16.msra.mxu0 %v753
    %1029 = vmatprep.mubr.bf16.mxu0 %v132
    %1030 = vmatmul.mubr.bf16.gmra.mrb[0].mxu0 %v131
    %v1031 = vpop.f32.mrb[0].mxu0
    %v1032 = vadd.f32 %v991, %v1031
    %v1033 = vpop.f32.mrb[0].mxu0
    %v1034 = vadd.f32 %v993, %v1033
    %v1035 = vpop.f32.mrb[0].mxu0
    %v1036 = vpop.f32.mrb[0].mxu0
    %1037 = vdwg.mxu0
    %1038 = vmatprep.subr.bf16.mxu0 %v756
    %1039 = vmatpush1.bf16.msra.mxu0 %v755
    %1040 = vmatprep.subr.bf16.mxu0 %v758
    %1041 = vmatpush1.bf16.msra.mxu0 %v757
    %1042 = vmatprep.subr.bf16.mxu0 %v760
    %1043 = vmatpush1.bf16.msra.mxu0 %v759
    %1044 = vmatprep.subr.bf16.mxu0 %v762
    %1045 = vmatpush1.bf16.msra.mxu0 %v761
    %1046 = vmatprep.subr.bf16.mxu0 %v764
    %1047 = vmatpush1.bf16.msra.mxu0 %v763
    %1048 = vmatprep.subr.bf16.mxu0 %v766
    %1049 = vmatpush1.bf16.msra.mxu0 %v765
    %1050 = vmatprep.subr.bf16.mxu0 %v768
    %1051 = vmatpush1.bf16.msra.mxu0 %v767
    %1052 = vmatprep.subr.bf16.mxu0 %v770
    %1053 = vmatpush1.bf16.msra.mxu0 %v769
    %1054 = vmatprep.subr.bf16.mxu0 %v772
    %1055 = vmatpush1.bf16.msra.mxu0 %v771
    %1056 = vmatprep.subr.bf16.mxu0 %v774
    %1057 = vmatpush1.bf16.msra.mxu0 %v773
    %1058 = vmatprep.subr.bf16.mxu0 %v776
    %1059 = vmatpush1.bf16.msra.mxu0 %v775
    %1060 = vmatprep.subr.bf16.mxu0 %v778
    %1061 = vmatpush1.bf16.msra.mxu0 %v777
    %1062 = vmatprep.subr.bf16.mxu0 %v780
    %1063 = vmatpush1.bf16.msra.mxu0 %v779
    %1064 = vmatprep.subr.bf16.mxu0 %v782
    %1065 = vmatpush1.bf16.msra.mxu0 %v781
    %1066 = vmatprep.subr.bf16.mxu0 %v784
    %1067 = vmatpush1.bf16.msra.mxu0 %v783
    %1068 = vmatprep.subr.bf16.mxu0 %v786
    %1069 = vmatpush1.bf16.msra.mxu0 %v785
    %1070 = vmatprep.mubr.bf16.mxu0 %v134
    %1071 = vmatmul.mubr.bf16.gmra.mrb[0].mxu0 %v133
    %v1072 = vpop.f32.mrb[0].mxu0
    %v1073 = vadd.f32 %v1032, %v1072
    %v1074 = vpop.f32.mrb[0].mxu0
    %v1075 = vadd.f32 %v1034, %v1074
    %v1076 = vpop.f32.mrb[0].mxu0
    %v1077 = vpop.f32.mrb[0].mxu0
    %1078 = vdwg.mxu0
    %v1079 = vmax.f32 %v1073, 0.0
    %v1080 = vmax.f32 %v1075, 0.0
    %v1081 = vpack.c.bf16 %v1079, %v1079
    %v1082 = vpack.c.bf16 %v1080, %v1080
    %v1083 = vld [vmem:[#allocation7] sm:$0xff]
    %v1084 = vld [vmem:[#allocation7 + $0x8] sm:$0xff]
    %v1085 = vld [vmem:[#allocation7 + $0x10] sm:$0xff]
    %v1086 = vld [vmem:[#allocation7 + $0x18] sm:$0xff]
    %v1087 = vld [vmem:[#allocation7 + $0x20] sm:$0xff]
    %v1088 = vld [vmem:[#allocation7 + $0x28] sm:$0xff]
    %v1089 = vld [vmem:[#allocation7 + $0x30] sm:$0xff]
    %v1090 = vld [vmem:[#allocation7 + $0x38] sm:$0xff]
    %v1091 = vld [vmem:[#allocation7 + $0x40] sm:$0xff]
    %v1092 = vld [vmem:[#allocation7 + $0x48] sm:$0xff]
    %v1093 = vld [vmem:[#allocation7 + $0x50] sm:$0xff]
    %v1094 = vld [vmem:[#allocation7 + $0x58] sm:$0xff]
    %v1095 = vld [vmem:[#allocation7 + $0x60] sm:$0xff]
    %v1096 = vld [vmem:[#allocation7 + $0x68] sm:$0xff]
    %v1097 = vld [vmem:[#allocation7 + $0x70] sm:$0xff]
    %v1098 = vld [vmem:[#allocation7 + $0x78] sm:$0xff]
    %v1099 = vld [vmem:[#allocation7 + $0x80] sm:$0xff]
    %v1100 = vld [vmem:[#allocation7 + $0x88] sm:$0xff]
    %v1101 = vld [vmem:[#allocation7 + $0x90] sm:$0xff]
    %v1102 = vld [vmem:[#allocation7 + $0x98] sm:$0xff]
    %v1103 = vld [vmem:[#allocation7 + $0xa0] sm:$0xff]
    %v1104 = vld [vmem:[#allocation7 + $0xa8] sm:$0xff]
    %v1105 = vld [vmem:[#allocation7 + $0xb0] sm:$0xff]
    %v1106 = vld [vmem:[#allocation7 + $0xb8] sm:$0xff]
    %v1107 = vld [vmem:[#allocation7 + $0xc0] sm:$0xff]
    %v1108 = vld [vmem:[#allocation7 + $0xc8] sm:$0xff]
    %v1109 = vld [vmem:[#allocation7 + $0xd0] sm:$0xff]
    %v1110 = vld [vmem:[#allocation7 + $0xd8] sm:$0xff]
    %v1111 = vld [vmem:[#allocation7 + $0xe0] sm:$0xff]
    %v1112 = vld [vmem:[#allocation7 + $0xe8] sm:$0xff]
    %v1113 = vld [vmem:[#allocation7 + $0xf0] sm:$0xff]
    %v1114 = vld [vmem:[#allocation7 + $0xf8] sm:$0xff]
    %v1115 = vld [vmem:[#allocation8] sm:$0x3]
    %v1117 = vlaneseq
    %v1118 = vshrl.u32 %v1117, 7
    %v1119 = vsub.s32 0, %v1118
    %v1120 = vrot.slane %v1115, %v1119
    %v1121 = vlaneseq
    %v1122 = vshrl.u32 %v1121, 7
    %v1123 = vsub.s32 1, %v1122
    %v1124 = vrot.slane %v1115, %v1123
    %v1159 = vunpack.c.l.b16 %v1083
    %v1160 = vunpack.c.h.b16 %v1083
    %v1161 = vunpack.c.l.b16 %v1084
    %v1162 = vunpack.c.h.b16 %v1084
    %v1163 = vunpack.c.l.b16 %v1085
    %v1164 = vunpack.c.h.b16 %v1085
    %v1165 = vunpack.c.l.b16 %v1086
    %v1166 = vunpack.c.h.b16 %v1086
    %v1167 = vunpack.c.l.b16 %v1087
    %v1168 = vunpack.c.h.b16 %v1087
    %v1169 = vunpack.c.l.b16 %v1088
    %v1170 = vunpack.c.h.b16 %v1088
    %v1171 = vunpack.c.l.b16 %v1089
    %v1172 = vunpack.c.h.b16 %v1089
    %v1173 = vunpack.c.l.b16 %v1090
    %v1174 = vunpack.c.h.b16 %v1090
    %v1175 = vunpack.c.l.b16 %v1091
    %v1176 = vunpack.c.h.b16 %v1091
    %v1177 = vunpack.c.l.b16 %v1092
    %v1178 = vunpack.c.h.b16 %v1092
    %v1179 = vunpack.c.l.b16 %v1093
    %v1180 = vunpack.c.h.b16 %v1093
    %v1181 = vunpack.c.l.b16 %v1094
    %v1182 = vunpack.c.h.b16 %v1094
    %v1183 = vunpack.c.l.b16 %v1095
    %v1184 = vunpack.c.h.b16 %v1095
    %v1185 = vunpack.c.l.b16 %v1096
    %v1186 = vunpack.c.h.b16 %v1096
    %v1187 = vunpack.c.l.b16 %v1097
    %v1188 = vunpack.c.h.b16 %v1097
    %v1189 = vunpack.c.l.b16 %v1098
    %v1190 = vunpack.c.h.b16 %v1098
    %v1191 = vunpack.c.l.b16 %v1099
    %v1192 = vunpack.c.h.b16 %v1099
    %v1193 = vunpack.c.l.b16 %v1100
    %v1194 = vunpack.c.h.b16 %v1100
    %v1195 = vunpack.c.l.b16 %v1101
    %v1196 = vunpack.c.h.b16 %v1101
    %v1197 = vunpack.c.l.b16 %v1102
    %v1198 = vunpack.c.h.b16 %v1102
    %v1199 = vunpack.c.l.b16 %v1103
    %v1200 = vunpack.c.h.b16 %v1103
    %v1201 = vunpack.c.l.b16 %v1104
    %v1202 = vunpack.c.h.b16 %v1104
    %v1203 = vunpack.c.l.b16 %v1105
    %v1204 = vunpack.c.h.b16 %v1105
    %v1205 = vunpack.c.l.b16 %v1106
    %v1206 = vunpack.c.h.b16 %v1106
    %v1207 = vunpack.c.l.b16 %v1107
    %v1208 = vunpack.c.h.b16 %v1107
    %v1209 = vunpack.c.l.b16 %v1108
    %v1210 = vunpack.c.h.b16 %v1108
    %v1211 = vunpack.c.l.b16 %v1109
    %v1212 = vunpack.c.h.b16 %v1109
    %v1213 = vunpack.c.l.b16 %v1110
    %v1214 = vunpack.c.h.b16 %v1110
    %v1215 = vunpack.c.l.b16 %v1111
    %v1216 = vunpack.c.h.b16 %v1111
    %v1217 = vunpack.c.l.b16 %v1112
    %v1218 = vunpack.c.h.b16 %v1112
    %v1219 = vunpack.c.l.b16 %v1113
    %v1220 = vunpack.c.h.b16 %v1113
    %v1221 = vunpack.c.l.b16 %v1114
    %v1222 = vunpack.c.h.b16 %v1114
    %v1223 = vpack.c.b16 %v1161, %v1159
    %v1224 = vpack.c.b16 %v1162, %v1160
    %v1225 = vpack.c.b16 %v1165, %v1163
    %v1226 = vpack.c.b16 %v1166, %v1164
    %v1227 = vpack.c.b16 %v1169, %v1167
    %v1228 = vpack.c.b16 %v1170, %v1168
    %v1229 = vpack.c.b16 %v1173, %v1171
    %v1230 = vpack.c.b16 %v1174, %v1172
    %v1231 = vpack.c.b16 %v1177, %v1175
    %v1232 = vpack.c.b16 %v1178, %v1176
    %v1233 = vpack.c.b16 %v1181, %v1179
    %v1234 = vpack.c.b16 %v1182, %v1180
    %v1235 = vpack.c.b16 %v1185, %v1183
    %v1236 = vpack.c.b16 %v1186, %v1184
    %v1237 = vpack.c.b16 %v1189, %v1187
    %v1238 = vpack.c.b16 %v1190, %v1188
    %v1239 = vpack.c.b16 %v1193, %v1191
    %v1240 = vpack.c.b16 %v1194, %v1192
    %v1241 = vpack.c.b16 %v1197, %v1195
    %v1242 = vpack.c.b16 %v1198, %v1196
    %v1243 = vpack.c.b16 %v1201, %v1199
    %v1244 = vpack.c.b16 %v1202, %v1200
    %v1245 = vpack.c.b16 %v1205, %v1203
    %v1246 = vpack.c.b16 %v1206, %v1204
    %v1247 = vpack.c.b16 %v1209, %v1207
    %v1248 = vpack.c.b16 %v1210, %v1208
    %v1249 = vpack.c.b16 %v1213, %v1211
    %v1250 = vpack.c.b16 %v1214, %v1212
    %v1251 = vpack.c.b16 %v1217, %v1215
    %v1252 = vpack.c.b16 %v1218, %v1216
    %v1253 = vpack.c.b16 %v1221, %v1219
    %v1254 = vpack.c.b16 %v1222, %v1220
    %1287 = vmatprep.subr.bf16.mxu0 %v1224
    %1288 = vmatpush1.bf16.msra.mxu0 %v1223
    %1289 = vmatprep.subr.bf16.mxu0 %v1226
    %1290 = vmatpush1.bf16.msra.mxu0 %v1225
    %1291 = vmatprep.subr.bf16.mxu0 %v1228
    %1292 = vmatpush1.bf16.msra.mxu0 %v1227
    %1293 = vmatprep.subr.bf16.mxu0 %v1230
    %1294 = vmatpush1.bf16.msra.mxu0 %v1229
    %1295 = vmatprep.subr.bf16.mxu0 %v1232
    %1296 = vmatpush1.bf16.msra.mxu0 %v1231
    %1297 = vmatprep.subr.bf16.mxu0 %v1234
    %1298 = vmatpush1.bf16.msra.mxu0 %v1233
    %1299 = vmatprep.subr.bf16.mxu0 %v1236
    %1300 = vmatpush1.bf16.msra.mxu0 %v1235
    %1301 = vmatprep.subr.bf16.mxu0 %v1238
    %1302 = vmatpush1.bf16.msra.mxu0 %v1237
    %1303 = vmatprep.subr.bf16.mxu0 %v1240
    %1304 = vmatpush1.bf16.msra.mxu0 %v1239
    %1305 = vmatprep.subr.bf16.mxu0 %v1242
    %1306 = vmatpush1.bf16.msra.mxu0 %v1241
    %1307 = vmatprep.subr.bf16.mxu0 %v1244
    %1308 = vmatpush1.bf16.msra.mxu0 %v1243
    %1309 = vmatprep.subr.bf16.mxu0 %v1246
    %1310 = vmatpush1.bf16.msra.mxu0 %v1245
    %1311 = vmatprep.subr.bf16.mxu0 %v1248
    %1312 = vmatpush1.bf16.msra.mxu0 %v1247
    %1313 = vmatprep.subr.bf16.mxu0 %v1250
    %1314 = vmatpush1.bf16.msra.mxu0 %v1249
    %1315 = vmatprep.subr.bf16.mxu0 %v1252
    %1316 = vmatpush1.bf16.msra.mxu0 %v1251
    %1317 = vmatprep.subr.bf16.mxu0 %v1254
    %1318 = vmatpush1.bf16.msra.mxu0 %v1253
    %1319 = vmatprep.mubr.bf16.mxu0 %v1082
    %1320 = vmatmul.mubr.bf16.gmra.mrb[0].mxu0 %v1081
    %v1321 = vpop.f32.mrb[0].mxu0
    %v1322 = vadd.f32 %v1120, %v1321
    %v1323 = vpop.f32.mrb[0].mxu0
    %v1324 = vadd.f32 %v1124, %v1323
    %v1325 = vpop.f32.mrb[0].mxu0
    %v1326 = vpop.f32.mrb[0].mxu0
    %1327 = vdwg.mxu0
    %v1328 = vmul.f32 %v1324, 0.5
    %v1329 = vmul.f32 %v1328, 1.442695
    %v1330 = vpow.pop %v1329
    %v1331 = vld [vmem:[%s9] sm:$0xff]
    %v1332 = vmul.f32 %v1331, %v1330
    %v1333 = vadd.f32 %v1322, %v1332
    %v1334 = vpack.c.bf16 %v1333, %v1333
    %v1335 = vld [vmem:[#allocation10] sm:$0xff]
    %v1336 = vld [vmem:[#allocation10 + $0x8] sm:$0xff]
    %v1337 = vld [vmem:[#allocation10 + $0x10] sm:$0xff]
    %v1338 = vld [vmem:[#allocation10 + $0x18] sm:$0xff]
    %v1339 = vld [vmem:[#allocation10 + $0x20] sm:$0xff]
    %v1340 = vld [vmem:[#allocation10 + $0x28] sm:$0xff]
    %v1341 = vld [vmem:[#allocation10 + $0x30] sm:$0xff]
    %v1342 = vld [vmem:[#allocation10 + $0x38] sm:$0xff]
    %v1343 = vld [vmem:[#allocation10 + $0x40] sm:$0xff]
    %v1344 = vld [vmem:[#allocation10 + $0x48] sm:$0xff]
    %v1345 = vld [vmem:[#allocation10 + $0x50] sm:$0xff]
    %v1346 = vld [vmem:[#allocation10 + $0x58] sm:$0xff]
    %v1347 = vld [vmem:[#allocation10 + $0x60] sm:$0xff]
    %v1348 = vld [vmem:[#allocation10 + $0x68] sm:$0xff]
    %v1349 = vld [vmem:[#allocation10 + $0x70] sm:$0xff]
    %v1350 = vld [vmem:[#allocation10 + $0x78] sm:$0xff]
    %v1351 = vld [vmem:[%s6] sm:$0x3]
    %v1353 = vlaneseq
    %v1354 = vshrl.u32 %v1353, 7
    %v1355 = vsub.s32 0, %v1354
    %v1356 = vrot.slane %v1351, %v1355
    %v1357 = vlaneseq
    %v1358 = vshrl.u32 %v1357, 7
    %v1359 = vsub.s32 1, %v1358
    %v1360 = vrot.slane %v1351, %v1359
    %v1379 = vunpack.c.l.b16 %v1335
    %v1380 = vunpack.c.h.b16 %v1335
    %v1381 = vunpack.c.l.b16 %v1336
    %v1382 = vunpack.c.h.b16 %v1336
    %v1383 = vunpack.c.l.b16 %v1337
    %v1384 = vunpack.c.h.b16 %v1337
    %v1385 = vunpack.c.l.b16 %v1338
    %v1386 = vunpack.c.h.b16 %v1338
    %v1387 = vunpack.c.l.b16 %v1339
    %v1388 = vunpack.c.h.b16 %v1339
    %v1389 = vunpack.c.l.b16 %v1340
    %v1390 = vunpack.c.h.b16 %v1340
    %v1391 = vunpack.c.l.b16 %v1341
    %v1392 = vunpack.c.h.b16 %v1341
    %v1393 = vunpack.c.l.b16 %v1342
    %v1394 = vunpack.c.h.b16 %v1342
    %v1395 = vunpack.c.l.b16 %v1343
    %v1396 = vunpack.c.h.b16 %v1343
    %v1397 = vunpack.c.l.b16 %v1344
    %v1398 = vunpack.c.h.b16 %v1344
    %v1399 = vunpack.c.l.b16 %v1345
    %v1400 = vunpack.c.h.b16 %v1345
    %v1401 = vunpack.c.l.b16 %v1346
    %v1402 = vunpack.c.h.b16 %v1346
    %v1403 = vunpack.c.l.b16 %v1347
    %v1404 = vunpack.c.h.b16 %v1347
    %v1405 = vunpack.c.l.b16 %v1348
    %v1406 = vunpack.c.h.b16 %v1348
    %v1407 = vunpack.c.l.b16 %v1349
    %v1408 = vunpack.c.h.b16 %v1349
    %v1409 = vunpack.c.l.b16 %v1350
    %v1410 = vunpack.c.h.b16 %v1350
    %v1411 = vpack.c.b16 %v1381, %v1379
    %v1412 = vpack.c.b16 %v1382, %v1380
    %v1413 = vpack.c.b16 %v1385, %v1383
    %v1414 = vpack.c.b16 %v1386, %v1384
    %v1415 = vpack.c.b16 %v1389, %v1387
    %v1416 = vpack.c.b16 %v1390, %v1388
    %v1417 = vpack.c.b16 %v1393, %v1391
    %v1418 = vpack.c.b16 %v1394, %v1392
    %v1419 = vpack.c.b16 %v1397, %v1395
    %v1420 = vpack.c.b16 %v1398, %v1396
    %v1421 = vpack.c.b16 %v1401, %v1399
    %v1422 = vpack.c.b16 %v1402, %v1400
    %v1423 = vpack.c.b16 %v1405, %v1403
    %v1424 = vpack.c.b16 %v1406, %v1404
    %v1425 = vpack.c.b16 %v1409, %v1407
    %v1426 = vpack.c.b16 %v1410, %v1408
    %1443 = vmatprep.subr.bf16.mxu0 %v1412
    %1444 = vmatpush1.bf16.msra.mxu0 %v1411
    %1445 = vmatprep.subr.bf16.mxu0 %v1414
    %1446 = vmatpush1.bf16.msra.mxu0 %v1413
    %1447 = vmatprep.subr.bf16.mxu0 %v1416
    %1448 = vmatpush1.bf16.msra.mxu0 %v1415
    %1449 = vmatprep.subr.bf16.mxu0 %v1418
    %1450 = vmatpush1.bf16.msra.mxu0 %v1417
    %1451 = vmatprep.subr.bf16.mxu0 %v1420
    %1452 = vmatpush1.bf16.msra.mxu0 %v1419
    %1453 = vmatprep.subr.bf16.mxu0 %v1422
    %1454 = vmatpush1.bf16.msra.mxu0 %v1421
    %1455 = vmatprep.subr.bf16.mxu0 %v1424
    %1456 = vmatpush1.bf16.msra.mxu0 %v1423
    %1457 = vmatprep.subr.bf16.mxu0 %v1426
    %1458 = vmatpush1.bf16.msra.mxu0 %v1425
    %1459 = vmatprep.subr.bf16.mxu0 0
    %1460 = vmatpush1.bf16.msra.mxu0 0
    %1461 = vmatprep.subr.bf16.mxu0 0
    %1462 = vmatpush1.bf16.msra.mxu0 0
    %1463 = vmatprep.subr.bf16.mxu0 0
    %1464 = vmatpush1.bf16.msra.mxu0 0
    %1465 = vmatprep.subr.bf16.mxu0 0
    %1466 = vmatpush1.bf16.msra.mxu0 0
    %1467 = vmatprep.subr.bf16.mxu0 0
    %1468 = vmatpush1.bf16.msra.mxu0 0
    %1469 = vmatprep.subr.bf16.mxu0 0
    %1470 = vmatpush1.bf16.msra.mxu0 0
    %1471 = vmatprep.subr.bf16.mxu0 0
    %1472 = vmatpush1.bf16.msra.mxu0 0
    %1473 = vmatprep.subr.bf16.mxu0 0
    %1474 = vmatpush1.bf16.msra.mxu0 0
    %1475 = vmatprep.mubr.bf16.mxu0 0
    %1476 = vmatmul.mubr.bf16.gmra.mrb[0].mxu0 %v1334
    %v1477 = vpop.f32.mrb[0].mxu0
    %v1478 = vadd.f32 %v1356, %v1477
    %v1479 = vpop.f32.mrb[0].mxu0
    %v1480 = vadd.f32 %v1360, %v1479
    %v1481 = vpop.f32.mrb[0].mxu0
    %v1482 = vpop.f32.mrb[0].mxu0
    %1483 = vdwg.mxu0
    %v1484 = vmax.f32 %v1478, 0.0
    %v1485 = vmax.f32 %v1480, 0.0
    %v1486 = vpack.c.bf16 %v1484, %v1484
    %v1487 = vpack.c.bf16 %v1485, %v1485
    %v1488 = vld [vmem:[#allocation11] sm:$0xff]
    %v1489 = vld [vmem:[#allocation11 + $0x8] sm:$0xff]
    %v1490 = vld [vmem:[#allocation11 + $0x10] sm:$0xff]
    %v1491 = vld [vmem:[#allocation11 + $0x18] sm:$0xff]
    %v1492 = vld [vmem:[#allocation11 + $0x20] sm:$0xff]
    %v1493 = vld [vmem:[#allocation11 + $0x28] sm:$0xff]
    %v1494 = vld [vmem:[#allocation11 + $0x30] sm:$0xff]
    %v1495 = vld [vmem:[#allocation11 + $0x38] sm:$0xff]
    %v1496 = vld [vmem:[#allocation11 + $0x40] sm:$0xff]
    %v1497 = vld [vmem:[#allocation11 + $0x48] sm:$0xff]
    %v1498 = vld [vmem:[#allocation11 + $0x50] sm:$0xff]
    %v1499 = vld [vmem:[#allocation11 + $0x58] sm:$0xff]
    %v1500 = vld [vmem:[#allocation11 + $0x60] sm:$0xff]
    %v1501 = vld [vmem:[#allocation11 + $0x68] sm:$0xff]
    %v1502 = vld [vmem:[#allocation11 + $0x70] sm:$0xff]
    %v1503 = vld [vmem:[#allocation11 + $0x78] sm:$0xff]
    %v1504 = vld [vmem:[#allocation11 + $0x80] sm:$0xff]
    %v1505 = vld [vmem:[#allocation11 + $0x88] sm:$0xff]
    %v1506 = vld [vmem:[#allocation11 + $0x90] sm:$0xff]
    %v1507 = vld [vmem:[#allocation11 + $0x98] sm:$0xff]
    %v1508 = vld [vmem:[#allocation11 + $0xa0] sm:$0xff]
    %v1509 = vld [vmem:[#allocation11 + $0xa8] sm:$0xff]
    %v1510 = vld [vmem:[#allocation11 + $0xb0] sm:$0xff]
    %v1511 = vld [vmem:[#allocation11 + $0xb8] sm:$0xff]
    %v1512 = vld [vmem:[#allocation11 + $0xc0] sm:$0xff]
    %v1513 = vld [vmem:[#allocation11 + $0xc8] sm:$0xff]
    %v1514 = vld [vmem:[#allocation11 + $0xd0] sm:$0xff]
    %v1515 = vld [vmem:[#allocation11 + $0xd8] sm:$0xff]
    %v1516 = vld [vmem:[#allocation11 + $0xe0] sm:$0xff]
    %v1517 = vld [vmem:[#allocation11 + $0xe8] sm:$0xff]
    %v1518 = vld [vmem:[#allocation11 + $0xf0] sm:$0xff]
    %v1519 = vld [vmem:[#allocation11 + $0xf8] sm:$0xff]
    %v1520 = vld [vmem:[#allocation11 + $0x100] sm:$0xff]
    %v1521 = vld [vmem:[#allocation11 + $0x108] sm:$0xff]
    %v1522 = vld [vmem:[#allocation11 + $0x110] sm:$0xff]
    %v1523 = vld [vmem:[#allocation11 + $0x118] sm:$0xff]
    %v1524 = vld [vmem:[#allocation11 + $0x120] sm:$0xff]
    %v1525 = vld [vmem:[#allocation11 + $0x128] sm:$0xff]
    %v1526 = vld [vmem:[#allocation11 + $0x130] sm:$0xff]
    %v1527 = vld [vmem:[#allocation11 + $0x138] sm:$0xff]
    %v1528 = vld [vmem:[#allocation11 + $0x140] sm:$0xff]
    %v1529 = vld [vmem:[#allocation11 + $0x148] sm:$0xff]
    %v1530 = vld [vmem:[#allocation11 + $0x150] sm:$0xff]
    %v1531 = vld [vmem:[#allocation11 + $0x158] sm:$0xff]
    %v1532 = vld [vmem:[#allocation11 + $0x160] sm:$0xff]
    %v1533 = vld [vmem:[#allocation11 + $0x168] sm:$0xff]
    %v1534 = vld [vmem:[#allocation11 + $0x170] sm:$0xff]
    %v1535 = vld [vmem:[#allocation11 + $0x178] sm:$0xff]
    %v1536 = vld [vmem:[#allocation11 + $0x180] sm:$0xff]
    %v1537 = vld [vmem:[#allocation11 + $0x188] sm:$0xff]
    %v1538 = vld [vmem:[#allocation11 + $0x190] sm:$0xff]
    %v1539 = vld [vmem:[#allocation11 + $0x198] sm:$0xff]
    %v1540 = vld [vmem:[#allocation11 + $0x1a0] sm:$0xff]
    %v1541 = vld [vmem:[#allocation11 + $0x1a8] sm:$0xff]
    %v1542 = vld [vmem:[#allocation11 + $0x1b0] sm:$0xff]
    %v1543 = vld [vmem:[#allocation11 + $0x1b8] sm:$0xff]
    %v1544 = vld [vmem:[#allocation11 + $0x1c0] sm:$0xff]
    %v1545 = vld [vmem:[#allocation11 + $0x1c8] sm:$0xff]
    %v1546 = vld [vmem:[#allocation11 + $0x1d0] sm:$0xff]
    %v1547 = vld [vmem:[#allocation11 + $0x1d8] sm:$0xff]
    %v1548 = vld [vmem:[#allocation11 + $0x1e0] sm:$0xff]
    %v1549 = vld [vmem:[#allocation11 + $0x1e8] sm:$0xff]
    %v1550 = vld [vmem:[#allocation11 + $0x1f0] sm:$0xff]
    %v1551 = vld [vmem:[#allocation11 + $0x1f8] sm:$0xff]
    %v1552 = vld [vmem:[#allocation11 + $0x200] sm:$0xff]
    %v1553 = vld [vmem:[#allocation11 + $0x208] sm:$0xff]
    %v1554 = vld [vmem:[#allocation11 + $0x210] sm:$0xff]
    %v1555 = vld [vmem:[#allocation11 + $0x218] sm:$0xff]
    %v1556 = vld [vmem:[#allocation11 + $0x220] sm:$0xff]
    %v1557 = vld [vmem:[#allocation11 + $0x228] sm:$0xff]
    %v1558 = vld [vmem:[#allocation11 + $0x230] sm:$0xff]
    %v1559 = vld [vmem:[#allocation11 + $0x238] sm:$0xff]
    %v1560 = vld [vmem:[#allocation11 + $0x240] sm:$0xff]
    %v1561 = vld [vmem:[#allocation11 + $0x248] sm:$0xff]
    %v1562 = vld [vmem:[#allocation11 + $0x250] sm:$0xff]
    %v1563 = vld [vmem:[#allocation11 + $0x258] sm:$0xff]
    %v1564 = vld [vmem:[#allocation11 + $0x260] sm:$0xff]
    %v1565 = vld [vmem:[#allocation11 + $0x268] sm:$0xff]
    %v1566 = vld [vmem:[#allocation11 + $0x270] sm:$0xff]
    %v1567 = vld [vmem:[#allocation11 + $0x278] sm:$0xff]
    %v1568 = vld [vmem:[#allocation11 + $0x280] sm:$0xff]
    %v1569 = vld [vmem:[#allocation11 + $0x288] sm:$0xff]
    %v1570 = vld [vmem:[#allocation11 + $0x290] sm:$0xff]
    %v1571 = vld [vmem:[#allocation11 + $0x298] sm:$0xff]
    %v1572 = vld [vmem:[#allocation11 + $0x2a0] sm:$0xff]
    %v1573 = vld [vmem:[#allocation11 + $0x2a8] sm:$0xff]
    %v1574 = vld [vmem:[#allocation11 + $0x2b0] sm:$0xff]
    %v1575 = vld [vmem:[#allocation11 + $0x2b8] sm:$0xff]
    %v1576 = vld [vmem:[#allocation11 + $0x2c0] sm:$0xff]
    %v1577 = vld [vmem:[#allocation11 + $0x2c8] sm:$0xff]
    %v1578 = vld [vmem:[#allocation11 + $0x2d0] sm:$0xff]
    %v1579 = vld [vmem:[#allocation11 + $0x2d8] sm:$0xff]
    %v1580 = vld [vmem:[#allocation11 + $0x2e0] sm:$0xff]
    %v1581 = vld [vmem:[#allocation11 + $0x2e8] sm:$0xff]
    %v1582 = vld [vmem:[#allocation11 + $0x2f0] sm:$0xff]
    %v1583 = vld [vmem:[#allocation11 + $0x2f8] sm:$0xff]
    %v1584 = vld [vmem:[#allocation11 + $0x300] sm:$0xff]
    %v1585 = vld [vmem:[#allocation11 + $0x308] sm:$0xff]
    %v1586 = vld [vmem:[#allocation11 + $0x310] sm:$0xff]
    %v1587 = vld [vmem:[#allocation11 + $0x318] sm:$0xff]
    %v1588 = vld [vmem:[#allocation11 + $0x320] sm:$0xff]
    %v1589 = vld [vmem:[#allocation11 + $0x328] sm:$0xff]
    %v1590 = vld [vmem:[#allocation11 + $0x330] sm:$0xff]
    %v1591 = vld [vmem:[#allocation11 + $0x338] sm:$0xff]
    %v1592 = vld [vmem:[#allocation11 + $0x340] sm:$0xff]
    %v1593 = vld [vmem:[#allocation11 + $0x348] sm:$0xff]
    %v1594 = vld [vmem:[#allocation11 + $0x350] sm:$0xff]
    %v1595 = vld [vmem:[#allocation11 + $0x358] sm:$0xff]
    %v1596 = vld [vmem:[#allocation11 + $0x360] sm:$0xff]
    %v1597 = vld [vmem:[#allocation11 + $0x368] sm:$0xff]
    %v1598 = vld [vmem:[#allocation11 + $0x370] sm:$0xff]
    %v1599 = vld [vmem:[#allocation11 + $0x378] sm:$0xff]
    %v1600 = vld [vmem:[#allocation11 + $0x380] sm:$0xff]
    %v1601 = vld [vmem:[#allocation11 + $0x388] sm:$0xff]
    %v1602 = vld [vmem:[#allocation11 + $0x390] sm:$0xff]
    %v1603 = vld [vmem:[#allocation11 + $0x398] sm:$0xff]
    %v1604 = vld [vmem:[#allocation11 + $0x3a0] sm:$0xff]
    %v1605 = vld [vmem:[#allocation11 + $0x3a8] sm:$0xff]
    %v1606 = vld [vmem:[#allocation11 + $0x3b0] sm:$0xff]
    %v1607 = vld [vmem:[#allocation11 + $0x3b8] sm:$0xff]
    %v1608 = vld [vmem:[#allocation11 + $0x3c0] sm:$0xff]
    %v1609 = vld [vmem:[#allocation11 + $0x3c8] sm:$0xff]
    %v1610 = vld [vmem:[#allocation11 + $0x3d0] sm:$0xff]
    %v1611 = vld [vmem:[#allocation11 + $0x3d8] sm:$0xff]
    %v1612 = vld [vmem:[#allocation11 + $0x3e0] sm:$0xff]
    %v1613 = vld [vmem:[#allocation11 + $0x3e8] sm:$0xff]
    %v1614 = vld [vmem:[#allocation11 + $0x3f0] sm:$0xff]
    %v1615 = vld [vmem:[#allocation11 + $0x3f8] sm:$0xff]
    %v1616 = vld [vmem:[%s8] sm:$0xff]
    %v1618 = vlaneseq
    %v1619 = vshrl.u32 %v1618, 7
    %v1620 = vsub.s32 0, %v1619
    %v1621 = vrot.slane %v1616, %v1620
    %v1622 = vlaneseq
    %v1623 = vshrl.u32 %v1622, 7
    %v1624 = vsub.s32 1, %v1623
    %v1625 = vrot.slane %v1616, %v1624
    %v1626 = vlaneseq
    %v1627 = vshrl.u32 %v1626, 7
    %v1628 = vsub.s32 2, %v1627
    %v1629 = vrot.slane %v1616, %v1628
    %v1630 = vlaneseq
    %v1631 = vshrl.u32 %v1630, 7
    %v1632 = vsub.s32 3, %v1631
    %v1633 = vrot.slane %v1616, %v1632
    %v1634 = vlaneseq
    %v1635 = vshrl.u32 %v1634, 7
    %v1636 = vsub.s32 4, %v1635
    %v1637 = vrot.slane %v1616, %v1636
    %v1638 = vlaneseq
    %v1639 = vshrl.u32 %v1638, 7
    %v1640 = vsub.s32 5, %v1639
    %v1641 = vrot.slane %v1616, %v1640
    %v1642 = vlaneseq
    %v1643 = vshrl.u32 %v1642, 7
    %v1644 = vsub.s32 6, %v1643
    %v1645 = vrot.slane %v1616, %v1644
    %v1646 = vlaneseq
    %v1647 = vshrl.u32 %v1646, 7
    %v1648 = vsub.s32 7, %v1647
    %v1649 = vrot.slane %v1616, %v1648
    %v1786 = vunpack.c.l.b16 %v1488
    %v1787 = vunpack.c.h.b16 %v1488
    %v1788 = vunpack.c.l.b16 %v1489
    %v1789 = vunpack.c.h.b16 %v1489
    %v1790 = vunpack.c.l.b16 %v1490
    %v1791 = vunpack.c.h.b16 %v1490
    %v1792 = vunpack.c.l.b16 %v1491
    %v1793 = vunpack.c.h.b16 %v1491
    %v1794 = vunpack.c.l.b16 %v1492
    %v1795 = vunpack.c.h.b16 %v1492
    %v1796 = vunpack.c.l.b16 %v1493
    %v1797 = vunpack.c.h.b16 %v1493
    %v1798 = vunpack.c.l.b16 %v1494
    %v1799 = vunpack.c.h.b16 %v1494
    %v1800 = vunpack.c.l.b16 %v1495
    %v1801 = vunpack.c.h.b16 %v1495
    %v1802 = vunpack.c.l.b16 %v1496
    %v1803 = vunpack.c.h.b16 %v1496
    %v1804 = vunpack.c.l.b16 %v1497
    %v1805 = vunpack.c.h.b16 %v1497
    %v1806 = vunpack.c.l.b16 %v1498
    %v1807 = vunpack.c.h.b16 %v1498
    %v1808 = vunpack.c.l.b16 %v1499
    %v1809 = vunpack.c.h.b16 %v1499
    %v1810 = vunpack.c.l.b16 %v1500
    %v1811 = vunpack.c.h.b16 %v1500
    %v1812 = vunpack.c.l.b16 %v1501
    %v1813 = vunpack.c.h.b16 %v1501
    %v1814 = vunpack.c.l.b16 %v1502
    %v1815 = vunpack.c.h.b16 %v1502
    %v1816 = vunpack.c.l.b16 %v1503
    %v1817 = vunpack.c.h.b16 %v1503
    %v1818 = vunpack.c.l.b16 %v1504
    %v1819 = vunpack.c.h.b16 %v1504
    %v1820 = vunpack.c.l.b16 %v1505
    %v1821 = vunpack.c.h.b16 %v1505
    %v1822 = vunpack.c.l.b16 %v1506
    %v1823 = vunpack.c.h.b16 %v1506
    %v1824 = vunpack.c.l.b16 %v1507
    %v1825 = vunpack.c.h.b16 %v1507
    %v1826 = vunpack.c.l.b16 %v1508
    %v1827 = vunpack.c.h.b16 %v1508
    %v1828 = vunpack.c.l.b16 %v1509
    %v1829 = vunpack.c.h.b16 %v1509
    %v1830 = vunpack.c.l.b16 %v1510
    %v1831 = vunpack.c.h.b16 %v1510
    %v1832 = vunpack.c.l.b16 %v1511
    %v1833 = vunpack.c.h.b16 %v1511
    %v1834 = vunpack.c.l.b16 %v1512
    %v1835 = vunpack.c.h.b16 %v1512
    %v1836 = vunpack.c.l.b16 %v1513
    %v1837 = vunpack.c.h.b16 %v1513
    %v1838 = vunpack.c.l.b16 %v1514
    %v1839 = vunpack.c.h.b16 %v1514
    %v1840 = vunpack.c.l.b16 %v1515
    %v1841 = vunpack.c.h.b16 %v1515
    %v1842 = vunpack.c.l.b16 %v1516
    %v1843 = vunpack.c.h.b16 %v1516
    %v1844 = vunpack.c.l.b16 %v1517
    %v1845 = vunpack.c.h.b16 %v1517
    %v1846 = vunpack.c.l.b16 %v1518
    %v1847 = vunpack.c.h.b16 %v1518
    %v1848 = vunpack.c.l.b16 %v1519
    %v1849 = vunpack.c.h.b16 %v1519
    %v1850 = vunpack.c.l.b16 %v1520
    %v1851 = vunpack.c.h.b16 %v1520
    %v1852 = vunpack.c.l.b16 %v1521
    %v1853 = vunpack.c.h.b16 %v1521
    %v1854 = vunpack.c.l.b16 %v1522
    %v1855 = vunpack.c.h.b16 %v1522
    %v1856 = vunpack.c.l.b16 %v1523
    %v1857 = vunpack.c.h.b16 %v1523
    %v1858 = vunpack.c.l.b16 %v1524
    %v1859 = vunpack.c.h.b16 %v1524
    %v1860 = vunpack.c.l.b16 %v1525
    %v1861 = vunpack.c.h.b16 %v1525
    %v1862 = vunpack.c.l.b16 %v1526
    %v1863 = vunpack.c.h.b16 %v1526
    %v1864 = vunpack.c.l.b16 %v1527
    %v1865 = vunpack.c.h.b16 %v1527
    %v1866 = vunpack.c.l.b16 %v1528
    %v1867 = vunpack.c.h.b16 %v1528
    %v1868 = vunpack.c.l.b16 %v1529
    %v1869 = vunpack.c.h.b16 %v1529
    %v1870 = vunpack.c.l.b16 %v1530
    %v1871 = vunpack.c.h.b16 %v1530
    %v1872 = vunpack.c.l.b16 %v1531
    %v1873 = vunpack.c.h.b16 %v1531
    %v1874 = vunpack.c.l.b16 %v1532
    %v1875 = vunpack.c.h.b16 %v1532
    %v1876 = vunpack.c.l.b16 %v1533
    %v1877 = vunpack.c.h.b16 %v1533
    %v1878 = vunpack.c.l.b16 %v1534
    %v1879 = vunpack.c.h.b16 %v1534
    %v1880 = vunpack.c.l.b16 %v1535
    %v1881 = vunpack.c.h.b16 %v1535
    %v1882 = vunpack.c.l.b16 %v1536
    %v1883 = vunpack.c.h.b16 %v1536
    %v1884 = vunpack.c.l.b16 %v1537
    %v1885 = vunpack.c.h.b16 %v1537
    %v1886 = vunpack.c.l.b16 %v1538
    %v1887 = vunpack.c.h.b16 %v1538
    %v1888 = vunpack.c.l.b16 %v1539
    %v1889 = vunpack.c.h.b16 %v1539
    %v1890 = vunpack.c.l.b16 %v1540
    %v1891 = vunpack.c.h.b16 %v1540
    %v1892 = vunpack.c.l.b16 %v1541
    %v1893 = vunpack.c.h.b16 %v1541
    %v1894 = vunpack.c.l.b16 %v1542
    %v1895 = vunpack.c.h.b16 %v1542
    %v1896 = vunpack.c.l.b16 %v1543
    %v1897 = vunpack.c.h.b16 %v1543
    %v1898 = vunpack.c.l.b16 %v1544
    %v1899 = vunpack.c.h.b16 %v1544
    %v1900 = vunpack.c.l.b16 %v1545
    %v1901 = vunpack.c.h.b16 %v1545
    %v1902 = vunpack.c.l.b16 %v1546
    %v1903 = vunpack.c.h.b16 %v1546
    %v1904 = vunpack.c.l.b16 %v1547
    %v1905 = vunpack.c.h.b16 %v1547
    %v1906 = vunpack.c.l.b16 %v1548
    %v1907 = vunpack.c.h.b16 %v1548
    %v1908 = vunpack.c.l.b16 %v1549
    %v1909 = vunpack.c.h.b16 %v1549
    %v1910 = vunpack.c.l.b16 %v1550
    %v1911 = vunpack.c.h.b16 %v1550
    %v1912 = vunpack.c.l.b16 %v1551
    %v1913 = vunpack.c.h.b16 %v1551
    %v1914 = vunpack.c.l.b16 %v1552
    %v1915 = vunpack.c.h.b16 %v1552
    %v1916 = vunpack.c.l.b16 %v1553
    %v1917 = vunpack.c.h.b16 %v1553
    %v1918 = vunpack.c.l.b16 %v1554
    %v1919 = vunpack.c.h.b16 %v1554
    %v1920 = vunpack.c.l.b16 %v1555
    %v1921 = vunpack.c.h.b16 %v1555
    %v1922 = vunpack.c.l.b16 %v1556
    %v1923 = vunpack.c.h.b16 %v1556
    %v1924 = vunpack.c.l.b16 %v1557
    %v1925 = vunpack.c.h.b16 %v1557
    %v1926 = vunpack.c.l.b16 %v1558
    %v1927 = vunpack.c.h.b16 %v1558
    %v1928 = vunpack.c.l.b16 %v1559
    %v1929 = vunpack.c.h.b16 %v1559
    %v1930 = vunpack.c.l.b16 %v1560
    %v1931 = vunpack.c.h.b16 %v1560
    %v1932 = vunpack.c.l.b16 %v1561
    %v1933 = vunpack.c.h.b16 %v1561
    %v1934 = vunpack.c.l.b16 %v1562
    %v1935 = vunpack.c.h.b16 %v1562
    %v1936 = vunpack.c.l.b16 %v1563
    %v1937 = vunpack.c.h.b16 %v1563
    %v1938 = vunpack.c.l.b16 %v1564
    %v1939 = vunpack.c.h.b16 %v1564
    %v1940 = vunpack.c.l.b16 %v1565
    %v1941 = vunpack.c.h.b16 %v1565
    %v1942 = vunpack.c.l.b16 %v1566
    %v1943 = vunpack.c.h.b16 %v1566
    %v1944 = vunpack.c.l.b16 %v1567
    %v1945 = vunpack.c.h.b16 %v1567
    %v1946 = vunpack.c.l.b16 %v1568
    %v1947 = vunpack.c.h.b16 %v1568
    %v1948 = vunpack.c.l.b16 %v1569
    %v1949 = vunpack.c.h.b16 %v1569
    %v1950 = vunpack.c.l.b16 %v1570
    %v1951 = vunpack.c.h.b16 %v1570
    %v1952 = vunpack.c.l.b16 %v1571
    %v1953 = vunpack.c.h.b16 %v1571
    %v1954 = vunpack.c.l.b16 %v1572
    %v1955 = vunpack.c.h.b16 %v1572
    %v1956 = vunpack.c.l.b16 %v1573
    %v1957 = vunpack.c.h.b16 %v1573
    %v1958 = vunpack.c.l.b16 %v1574
    %v1959 = vunpack.c.h.b16 %v1574
    %v1960 = vunpack.c.l.b16 %v1575
    %v1961 = vunpack.c.h.b16 %v1575
    %v1962 = vunpack.c.l.b16 %v1576
    %v1963 = vunpack.c.h.b16 %v1576
    %v1964 = vunpack.c.l.b16 %v1577
    %v1965 = vunpack.c.h.b16 %v1577
    %v1966 = vunpack.c.l.b16 %v1578
    %v1967 = vunpack.c.h.b16 %v1578
    %v1968 = vunpack.c.l.b16 %v1579
    %v1969 = vunpack.c.h.b16 %v1579
    %v1970 = vunpack.c.l.b16 %v1580
    %v1971 = vunpack.c.h.b16 %v1580
    %v1972 = vunpack.c.l.b16 %v1581
    %v1973 = vunpack.c.h.b16 %v1581
    %v1974 = vunpack.c.l.b16 %v1582
    %v1975 = vunpack.c.h.b16 %v1582
    %v1976 = vunpack.c.l.b16 %v1583
    %v1977 = vunpack.c.h.b16 %v1583
    %v1978 = vunpack.c.l.b16 %v1584
    %v1979 = vunpack.c.h.b16 %v1584
    %v1980 = vunpack.c.l.b16 %v1585
    %v1981 = vunpack.c.h.b16 %v1585
    %v1982 = vunpack.c.l.b16 %v1586
    %v1983 = vunpack.c.h.b16 %v1586
    %v1984 = vunpack.c.l.b16 %v1587
    %v1985 = vunpack.c.h.b16 %v1587
    %v1986 = vunpack.c.l.b16 %v1588
    %v1987 = vunpack.c.h.b16 %v1588
    %v1988 = vunpack.c.l.b16 %v1589
    %v1989 = vunpack.c.h.b16 %v1589
    %v1990 = vunpack.c.l.b16 %v1590
    %v1991 = vunpack.c.h.b16 %v1590
    %v1992 = vunpack.c.l.b16 %v1591
    %v1993 = vunpack.c.h.b16 %v1591
    %v1994 = vunpack.c.l.b16 %v1592
    %v1995 = vunpack.c.h.b16 %v1592
    %v1996 = vunpack.c.l.b16 %v1593
    %v1997 = vunpack.c.h.b16 %v1593
    %v1998 = vunpack.c.l.b16 %v1594
    %v1999 = vunpack.c.h.b16 %v1594
    %v2000 = vunpack.c.l.b16 %v1595
    %v2001 = vunpack.c.h.b16 %v1595
    %v2002 = vunpack.c.l.b16 %v1596
    %v2003 = vunpack.c.h.b16 %v1596
    %v2004 = vunpack.c.l.b16 %v1597
    %v2005 = vunpack.c.h.b16 %v1597
    %v2006 = vunpack.c.l.b16 %v1598
    %v2007 = vunpack.c.h.b16 %v1598
    %v2008 = vunpack.c.l.b16 %v1599
    %v2009 = vunpack.c.h.b16 %v1599
    %v2010 = vunpack.c.l.b16 %v1600
    %v2011 = vunpack.c.h.b16 %v1600
    %v2012 = vunpack.c.l.b16 %v1601
    %v2013 = vunpack.c.h.b16 %v1601
    %v2014 = vunpack.c.l.b16 %v1602
    %v2015 = vunpack.c.h.b16 %v1602
    %v2016 = vunpack.c.l.b16 %v1603
    %v2017 = vunpack.c.h.b16 %v1603
    %v2018 = vunpack.c.l.b16 %v1604
    %v2019 = vunpack.c.h.b16 %v1604
    %v2020 = vunpack.c.l.b16 %v1605
    %v2021 = vunpack.c.h.b16 %v1605
    %v2022 = vunpack.c.l.b16 %v1606
    %v2023 = vunpack.c.h.b16 %v1606
    %v2024 = vunpack.c.l.b16 %v1607
    %v2025 = vunpack.c.h.b16 %v1607
    %v2026 = vunpack.c.l.b16 %v1608
    %v2027 = vunpack.c.h.b16 %v1608
    %v2028 = vunpack.c.l.b16 %v1609
    %v2029 = vunpack.c.h.b16 %v1609
    %v2030 = vunpack.c.l.b16 %v1610
    %v2031 = vunpack.c.h.b16 %v1610
    %v2032 = vunpack.c.l.b16 %v1611
    %v2033 = vunpack.c.h.b16 %v1611
    %v2034 = vunpack.c.l.b16 %v1612
    %v2035 = vunpack.c.h.b16 %v1612
    %v2036 = vunpack.c.l.b16 %v1613
    %v2037 = vunpack.c.h.b16 %v1613
    %v2038 = vunpack.c.l.b16 %v1614
    %v2039 = vunpack.c.h.b16 %v1614
    %v2040 = vunpack.c.l.b16 %v1615
    %v2041 = vunpack.c.h.b16 %v1615
    %v2042 = vpack.c.b16 %v1794, %v1786
    %v2043 = vpack.c.b16 %v1795, %v1787
    %v2044 = vpack.c.b16 %v1796, %v1788
    %v2045 = vpack.c.b16 %v1797, %v1789
    %v2046 = vpack.c.b16 %v1798, %v1790
    %v2047 = vpack.c.b16 %v1799, %v1791
    %v2048 = vpack.c.b16 %v1800, %v1792
    %v2049 = vpack.c.b16 %v1801, %v1793
    %v2050 = vpack.c.b16 %v1810, %v1802
    %v2051 = vpack.c.b16 %v1811, %v1803
    %v2052 = vpack.c.b16 %v1812, %v1804
    %v2053 = vpack.c.b16 %v1813, %v1805
    %v2054 = vpack.c.b16 %v1814, %v1806
    %v2055 = vpack.c.b16 %v1815, %v1807
    %v2056 = vpack.c.b16 %v1816, %v1808
    %v2057 = vpack.c.b16 %v1817, %v1809
    %v2058 = vpack.c.b16 %v1826, %v1818
    %v2059 = vpack.c.b16 %v1827, %v1819
    %v2060 = vpack.c.b16 %v1828, %v1820
    %v2061 = vpack.c.b16 %v1829, %v1821
    %v2062 = vpack.c.b16 %v1830, %v1822
    %v2063 = vpack.c.b16 %v1831, %v1823
    %v2064 = vpack.c.b16 %v1832, %v1824
    %v2065 = vpack.c.b16 %v1833, %v1825
    %v2066 = vpack.c.b16 %v1842, %v1834
    %v2067 = vpack.c.b16 %v1843, %v1835
    %v2068 = vpack.c.b16 %v1844, %v1836
    %v2069 = vpack.c.b16 %v1845, %v1837
    %v2070 = vpack.c.b16 %v1846, %v1838
    %v2071 = vpack.c.b16 %v1847, %v1839
    %v2072 = vpack.c.b16 %v1848, %v1840
    %v2073 = vpack.c.b16 %v1849, %v1841
    %v2074 = vpack.c.b16 %v1858, %v1850
    %v2075 = vpack.c.b16 %v1859, %v1851
    %v2076 = vpack.c.b16 %v1860, %v1852
    %v2077 = vpack.c.b16 %v1861, %v1853
    %v2078 = vpack.c.b16 %v1862, %v1854
    %v2079 = vpack.c.b16 %v1863, %v1855
    %v2080 = vpack.c.b16 %v1864, %v1856
    %v2081 = vpack.c.b16 %v1865, %v1857
    %v2082 = vpack.c.b16 %v1874, %v1866
    %v2083 = vpack.c.b16 %v1875, %v1867
    %v2084 = vpack.c.b16 %v1876, %v1868
    %v2085 = vpack.c.b16 %v1877, %v1869
    %v2086 = vpack.c.b16 %v1878, %v1870
    %v2087 = vpack.c.b16 %v1879, %v1871
    %v2088 = vpack.c.b16 %v1880, %v1872
    %v2089 = vpack.c.b16 %v1881, %v1873
    %v2090 = vpack.c.b16 %v1890, %v1882
    %v2091 = vpack.c.b16 %v1891, %v1883
    %v2092 = vpack.c.b16 %v1892, %v1884
    %v2093 = vpack.c.b16 %v1893, %v1885
    %v2094 = vpack.c.b16 %v1894, %v1886
    %v2095 = vpack.c.b16 %v1895, %v1887
    %v2096 = vpack.c.b16 %v1896, %v1888
    %v2097 = vpack.c.b16 %v1897, %v1889
    %v2098 = vpack.c.b16 %v1906, %v1898
    %v2099 = vpack.c.b16 %v1907, %v1899
    %v2100 = vpack.c.b16 %v1908, %v1900
    %v2101 = vpack.c.b16 %v1909, %v1901
    %v2102 = vpack.c.b16 %v1910, %v1902
    %v2103 = vpack.c.b16 %v1911, %v1903
    %v2104 = vpack.c.b16 %v1912, %v1904
    %v2105 = vpack.c.b16 %v1913, %v1905
    %v2106 = vpack.c.b16 %v1922, %v1914
    %v2107 = vpack.c.b16 %v1923, %v1915
    %v2108 = vpack.c.b16 %v1924, %v1916
    %v2109 = vpack.c.b16 %v1925, %v1917
    %v2110 = vpack.c.b16 %v1926, %v1918
    %v2111 = vpack.c.b16 %v1927, %v1919
    %v2112 = vpack.c.b16 %v1928, %v1920
    %v2113 = vpack.c.b16 %v1929, %v1921
    %v2114 = vpack.c.b16 %v1938, %v1930
    %v2115 = vpack.c.b16 %v1939, %v1931
    %v2116 = vpack.c.b16 %v1940, %v1932
    %v2117 = vpack.c.b16 %v1941, %v1933
    %v2118 = vpack.c.b16 %v1942, %v1934
    %v2119 = vpack.c.b16 %v1943, %v1935
    %v2120 = vpack.c.b16 %v1944, %v1936
    %v2121 = vpack.c.b16 %v1945, %v1937
    %v2122 = vpack.c.b16 %v1954, %v1946
    %v2123 = vpack.c.b16 %v1955, %v1947
    %v2124 = vpack.c.b16 %v1956, %v1948
    %v2125 = vpack.c.b16 %v1957, %v1949
    %v2126 = vpack.c.b16 %v1958, %v1950
    %v2127 = vpack.c.b16 %v1959, %v1951
    %v2128 = vpack.c.b16 %v1960, %v1952
    %v2129 = vpack.c.b16 %v1961, %v1953
    %v2130 = vpack.c.b16 %v1970, %v1962
    %v2131 = vpack.c.b16 %v1971, %v1963
    %v2132 = vpack.c.b16 %v1972, %v1964
    %v2133 = vpack.c.b16 %v1973, %v1965
    %v2134 = vpack.c.b16 %v1974, %v1966
    %v2135 = vpack.c.b16 %v1975, %v1967
    %v2136 = vpack.c.b16 %v1976, %v1968
    %v2137 = vpack.c.b16 %v1977, %v1969
    %v2138 = vpack.c.b16 %v1986, %v1978
    %v2139 = vpack.c.b16 %v1987, %v1979
    %v2140 = vpack.c.b16 %v1988, %v1980
    %v2141 = vpack.c.b16 %v1989, %v1981
    %v2142 = vpack.c.b16 %v1990, %v1982
    %v2143 = vpack.c.b16 %v1991, %v1983
    %v2144 = vpack.c.b16 %v1992, %v1984
    %v2145 = vpack.c.b16 %v1993, %v1985
    %v2146 = vpack.c.b16 %v2002, %v1994
    %v2147 = vpack.c.b16 %v2003, %v1995
    %v2148 = vpack.c.b16 %v2004, %v1996
    %v2149 = vpack.c.b16 %v2005, %v1997
    %v2150 = vpack.c.b16 %v2006, %v1998
    %v2151 = vpack.c.b16 %v2007, %v1999
    %v2152 = vpack.c.b16 %v2008, %v2000
    %v2153 = vpack.c.b16 %v2009, %v2001
    %v2154 = vpack.c.b16 %v2018, %v2010
    %v2155 = vpack.c.b16 %v2019, %v2011
    %v2156 = vpack.c.b16 %v2020, %v2012
    %v2157 = vpack.c.b16 %v2021, %v2013
    %v2158 = vpack.c.b16 %v2022, %v2014
    %v2159 = vpack.c.b16 %v2023, %v2015
    %v2160 = vpack.c.b16 %v2024, %v2016
    %v2161 = vpack.c.b16 %v2025, %v2017
    %v2162 = vpack.c.b16 %v2034, %v2026
    %v2163 = vpack.c.b16 %v2035, %v2027
    %v2164 = vpack.c.b16 %v2036, %v2028
    %v2165 = vpack.c.b16 %v2037, %v2029
    %v2166 = vpack.c.b16 %v2038, %v2030
    %v2167 = vpack.c.b16 %v2039, %v2031
    %v2168 = vpack.c.b16 %v2040, %v2032
    %v2169 = vpack.c.b16 %v2041, %v2033
    %2298 = vmatprep.subr.bf16.mxu0 %v2043
    %2299 = vmatpush1.bf16.msra.mxu0 %v2042
    %2300 = vmatprep.subr.bf16.mxu0 %v2051
    %2301 = vmatpush1.bf16.msra.mxu0 %v2050
    %2302 = vmatprep.subr.bf16.mxu0 %v2059
    %2303 = vmatpush1.bf16.msra.mxu0 %v2058
    %2304 = vmatprep.subr.bf16.mxu0 %v2067
    %2305 = vmatpush1.bf16.msra.mxu0 %v2066
    %2306 = vmatprep.subr.bf16.mxu0 %v2075
    %2307 = vmatpush1.bf16.msra.mxu0 %v2074
    %2308 = vmatprep.subr.bf16.mxu0 %v2083
    %2309 = vmatpush1.bf16.msra.mxu0 %v2082
    %2310 = vmatprep.subr.bf16.mxu0 %v2091
    %2311 = vmatpush1.bf16.msra.mxu0 %v2090
    %2312 = vmatprep.subr.bf16.mxu0 %v2099
    %2313 = vmatpush1.bf16.msra.mxu0 %v2098
    %2314 = vmatprep.subr.bf16.mxu0 %v2107
    %2315 = vmatpush1.bf16.msra.mxu0 %v2106
    %2316 = vmatprep.subr.bf16.mxu0 %v2115
    %2317 = vmatpush1.bf16.msra.mxu0 %v2114
    %2318 = vmatprep.subr.bf16.mxu0 %v2123
    %2319 = vmatpush1.bf16.msra.mxu0 %v2122
    %2320 = vmatprep.subr.bf16.mxu0 %v2131
    %2321 = vmatpush1.bf16.msra.mxu0 %v2130
    %2322 = vmatprep.subr.bf16.mxu0 %v2139
    %2323 = vmatpush1.bf16.msra.mxu0 %v2138
    %2324 = vmatprep.subr.bf16.mxu0 %v2147
    %2325 = vmatpush1.bf16.msra.mxu0 %v2146
    %2326 = vmatprep.subr.bf16.mxu0 %v2155
    %2327 = vmatpush1.bf16.msra.mxu0 %v2154
    %2328 = vmatprep.subr.bf16.mxu0 %v2163
    %2329 = vmatpush1.bf16.msra.mxu0 %v2162
    %2330 = vmatprep.mubr.bf16.mxu0 %v1487
    %2331 = vmatmul.mubr.bf16.gmra.mrb[0].mxu0 %v1486
    %v2332 = vpop.f32.mrb[0].mxu0
    %v2333 = vadd.f32 %v1621, %v2332
    %v2334 = vpop.f32.mrb[0].mxu0
    %v2335 = vadd.f32 %v1625, %v2334
    %v2336 = vpop.f32.mrb[0].mxu0
    %v2337 = vpop.f32.mrb[0].mxu0
    %2338 = vdwg.mxu0
    %2339 = vmatprep.subr.bf16.mxu0 %v2045
    %2340 = vmatpush1.bf16.msra.mxu0 %v2044
    %2341 = vmatprep.subr.bf16.mxu0 %v2053
    %2342 = vmatpush1.bf16.msra.mxu0 %v2052
    %2343 = vmatprep.subr.bf16.mxu0 %v2061
    %2344 = vmatpush1.bf16.msra.mxu0 %v2060
    %2345 = vmatprep.subr.bf16.mxu0 %v2069
    %2346 = vmatpush1.bf16.msra.mxu0 %v2068
    %2347 = vmatprep.subr.bf16.mxu0 %v2077
    %2348 = vmatpush1.bf16.msra.mxu0 %v2076
    %2349 = vmatprep.subr.bf16.mxu0 %v2085
    %2350 = vmatpush1.bf16.msra.mxu0 %v2084
    %2351 = vmatprep.subr.bf16.mxu0 %v2093
    %2352 = vmatpush1.bf16.msra.mxu0 %v2092
    %2353 = vmatprep.subr.bf16.mxu0 %v2101
    %2354 = vmatpush1.bf16.msra.mxu0 %v2100
    %2355 = vmatprep.subr.bf16.mxu0 %v2109
    %2356 = vmatpush1.bf16.msra.mxu0 %v2108
    %2357 = vmatprep.subr.bf16.mxu0 %v2117
    %2358 = vmatpush1.bf16.msra.mxu0 %v2116
    %2359 = vmatprep.subr.bf16.mxu0 %v2125
    %2360 = vmatpush1.bf16.msra.mxu0 %v2124
    %2361 = vmatprep.subr.bf16.mxu0 %v2133
    %2362 = vmatpush1.bf16.msra.mxu0 %v2132
    %2363 = vmatprep.subr.bf16.mxu0 %v2141
    %2364 = vmatpush1.bf16.msra.mxu0 %v2140
    %2365 = vmatprep.subr.bf16.mxu0 %v2149
    %2366 = vmatpush1.bf16.msra.mxu0 %v2148
    %2367 = vmatprep.subr.bf16.mxu0 %v2157
    %2368 = vmatpush1.bf16.msra.mxu0 %v2156
    %2369 = vmatprep.subr.bf16.mxu0 %v2165
    %2370 = vmatpush1.bf16.msra.mxu0 %v2164
    %2371 = vmatprep.mubr.bf16.mxu0 %v1487
    %2372 = vmatmul.mubr.bf16.gmra.mrb[0].mxu0 %v1486
    %v2373 = vpop.f32.mrb[0].mxu0
    %v2374 = vadd.f32 %v1629, %v2373
    %v2375 = vpop.f32.mrb[0].mxu0
    %v2376 = vadd.f32 %v1633, %v2375
    %v2377 = vpop.f32.mrb[0].mxu0
    %v2378 = vpop.f32.mrb[0].mxu0
    %2379 = vdwg.mxu0
    %2380 = vmatprep.subr.bf16.mxu0 %v2047
    %2381 = vmatpush1.bf16.msra.mxu0 %v2046
    %2382 = vmatprep.subr.bf16.mxu0 %v2055
    %2383 = vmatpush1.bf16.msra.mxu0 %v2054
    %2384 = vmatprep.subr.bf16.mxu0 %v2063
    %2385 = vmatpush1.bf16.msra.mxu0 %v2062
    %2386 = vmatprep.subr.bf16.mxu0 %v2071
    %2387 = vmatpush1.bf16.msra.mxu0 %v2070
    %2388 = vmatprep.subr.bf16.mxu0 %v2079
    %2389 = vmatpush1.bf16.msra.mxu0 %v2078
    %2390 = vmatprep.subr.bf16.mxu0 %v2087
    %2391 = vmatpush1.bf16.msra.mxu0 %v2086
    %2392 = vmatprep.subr.bf16.mxu0 %v2095
    %2393 = vmatpush1.bf16.msra.mxu0 %v2094
    %2394 = vmatprep.subr.bf16.mxu0 %v2103
    %2395 = vmatpush1.bf16.msra.mxu0 %v2102
    %2396 = vmatprep.subr.bf16.mxu0 %v2111
    %2397 = vmatpush1.bf16.msra.mxu0 %v2110
    %2398 = vmatprep.subr.bf16.mxu0 %v2119
    %2399 = vmatpush1.bf16.msra.mxu0 %v2118
    %2400 = vmatprep.subr.bf16.mxu0 %v2127
    %2401 = vmatpush1.bf16.msra.mxu0 %v2126
    %2402 = vmatprep.subr.bf16.mxu0 %v2135
    %2403 = vmatpush1.bf16.msra.mxu0 %v2134
    %2404 = vmatprep.subr.bf16.mxu0 %v2143
    %2405 = vmatpush1.bf16.msra.mxu0 %v2142
    %2406 = vmatprep.subr.bf16.mxu0 %v2151
    %2407 = vmatpush1.bf16.msra.mxu0 %v2150
    %2408 = vmatprep.subr.bf16.mxu0 %v2159
    %2409 = vmatpush1.bf16.msra.mxu0 %v2158
    %2410 = vmatprep.subr.bf16.mxu0 %v2167
    %2411 = vmatpush1.bf16.msra.mxu0 %v2166
    %2412 = vmatprep.mubr.bf16.mxu0 %v1487
    %2413 = vmatmul.mubr.bf16.gmra.mrb[0].mxu0 %v1486
    %v2414 = vpop.f32.mrb[0].mxu0
    %v2415 = vadd.f32 %v1637, %v2414
    %v2416 = vpop.f32.mrb[0].mxu0
    %v2417 = vadd.f32 %v1641, %v2416
    %v2418 = vpop.f32.mrb[0].mxu0
    %v2419 = vpop.f32.mrb[0].mxu0
    %2420 = vdwg.mxu0
    %2421 = vmatprep.subr.bf16.mxu0 %v2049
    %2422 = vmatpush1.bf16.msra.mxu0 %v2048
    %2423 = vmatprep.subr.bf16.mxu0 %v2057
    %2424 = vmatpush1.bf16.msra.mxu0 %v2056
    %2425 = vmatprep.subr.bf16.mxu0 %v2065
    %2426 = vmatpush1.bf16.msra.mxu0 %v2064
    %2427 = vmatprep.subr.bf16.mxu0 %v2073
    %2428 = vmatpush1.bf16.msra.mxu0 %v2072
    %2429 = vmatprep.subr.bf16.mxu0 %v2081
    %2430 = vmatpush1.bf16.msra.mxu0 %v2080
    %2431 = vmatprep.subr.bf16.mxu0 %v2089
    %2432 = vmatpush1.bf16.msra.mxu0 %v2088
    %2433 = vmatprep.subr.bf16.mxu0 %v2097
    %2434 = vmatpush1.bf16.msra.mxu0 %v2096
    %2435 = vmatprep.subr.bf16.mxu0 %v2105
    %2436 = vmatpush1.bf16.msra.mxu0 %v2104
    %2437 = vmatprep.subr.bf16.mxu0 %v2113
    %2438 = vmatpush1.bf16.msra.mxu0 %v2112
    %2439 = vmatprep.subr.bf16.mxu0 %v2121
    %2440 = vmatpush1.bf16.msra.mxu0 %v2120
    %2441 = vmatprep.subr.bf16.mxu0 %v2129
    %2442 = vmatpush1.bf16.msra.mxu0 %v2128
    %2443 = vmatprep.subr.bf16.mxu0 %v2137
    %2444 = vmatpush1.bf16.msra.mxu0 %v2136
    %2445 = vmatprep.subr.bf16.mxu0 %v2145
    %2446 = vmatpush1.bf16.msra.mxu0 %v2144
    %2447 = vmatprep.subr.bf16.mxu0 %v2153
    %2448 = vmatpush1.bf16.msra.mxu0 %v2152
    %2449 = vmatprep.subr.bf16.mxu0 %v2161
    %2450 = vmatpush1.bf16.msra.mxu0 %v2160
    %2451 = vmatprep.subr.bf16.mxu0 %v2169
    %2452 = vmatpush1.bf16.msra.mxu0 %v2168
    %2453 = vmatprep.mubr.bf16.mxu0 %v1487
    %2454 = vmatmul.mubr.bf16.gmra.mrb[0].mxu0 %v1486
    %v2455 = vpop.f32.mrb[0].mxu0
    %v2456 = vadd.f32 %v1645, %v2455
    %v2457 = vpop.f32.mrb[0].mxu0
    %v2458 = vadd.f32 %v1649, %v2457
    %v2459 = vpop.f32.mrb[0].mxu0
    %v2460 = vpop.f32.mrb[0].mxu0
    %2461 = vdwg.mxu0
    %v2462 = vsub.f32 0.0, %v2333
    %v2463 = vsub.f32 0.0, %v2335
    %v2464 = vsub.f32 0.0, %v2374
    %v2465 = vsub.f32 0.0, %v2376
    %v2466 = vsub.f32 0.0, %v2415
    %v2467 = vsub.f32 0.0, %v2417
    %v2468 = vsub.f32 0.0, %v2456
    %v2469 = vsub.f32 0.0, %v2458
    %v2470 = vmul.f32 %v2462, 1.442695
    %v2471 = vpow.pop %v2470
    %v2472 = vmul.f32 %v2463, 1.442695
    %v2473 = vpow.pop %v2472
    %v2474 = vmul.f32 %v2464, 1.442695
    %v2475 = vpow.pop %v2474
    %v2476 = vmul.f32 %v2465, 1.442695
    %v2477 = vpow.pop %v2476
    %v2478 = vmul.f32 %v2466, 1.442695
    %v2479 = vpow.pop %v2478
    %v2480 = vmul.f32 %v2467, 1.442695
    %v2481 = vpow.pop %v2480
    %v2482 = vmul.f32 %v2468, 1.442695
    %v2483 = vpow.pop %v2482
    %v2484 = vmul.f32 %v2469, 1.442695
    %v2485 = vpow.pop %v2484
    %v2486 = vadd.f32 %v2471, 1.0
    %v2487 = vadd.f32 %v2473, 1.0
    %v2488 = vadd.f32 %v2475, 1.0
    %v2489 = vadd.f32 %v2477, 1.0
    %v2490 = vadd.f32 %v2479, 1.0
    %v2491 = vadd.f32 %v2481, 1.0
    %v2492 = vadd.f32 %v2483, 1.0
    %v2493 = vadd.f32 %v2485, 1.0
    %v2494 = vrcp.pop %v2486
    %v2495 = vrcp.pop %v2487
    %v2496 = vrcp.pop %v2488
    %v2497 = vrcp.pop %v2489
    %v2498 = vrcp.pop %v2490
    %v2499 = vrcp.pop %v2491
    %v2500 = vrcp.pop %v2492
    %v2501 = vrcp.pop %v2493
    %2502 = vst [vmem:[#allocation13] sm:$0xff] %v2494
    %2503 = vst [vmem:[#allocation13 + $0x8] sm:$0xff] %v2495
    %2504 = vst [vmem:[#allocation13 + $0x10] sm:$0xff] %v2496
    %2505 = vst [vmem:[#allocation13 + $0x18] sm:$0xff] %v2497
    %2506 = vst [vmem:[#allocation13 + $0x20] sm:$0xff] %v2498
    %2507 = vst [vmem:[#allocation13 + $0x28] sm:$0xff] %v2499
    %2508 = vst [vmem:[#allocation13 + $0x30] sm:$0xff] %v2500
    %2509 = vst [vmem:[#allocation13 + $0x38] sm:$0xff] %v2501
    %2510 = vst [vmem:[#allocation14] sm:$0xff] %v1322
    %2511 = vst [vmem:[#allocation16] sm:$0xff] %v1324
    // Predicated region
    $region66: #{tpu_custom_call.1} parent=1 // pred_check
      _
    $region67: #{tpu_custom_call.1} parent=1 // pred_check_branch
      %2513 = sbr.rel (0) target = $region69
    $region68: #{tpu_custom_call.1} parent=1 // pred_region
      %s2515 = ssub.s32 1024, 1024
      %2516 = vsyncadd [#allocation4], %s2515
      %s2518 = sshll.u32 [#allocation13], 4
      %s2519 = int_to_ptr.vmem [resolvable:$true] %s2518
      %2521 = dma.vmem_to_hbm [thread:$0]  %s2519, 1024, %s10, [#allocation4]
    $region69: #{tpu_custom_call.1} parent=1 // pred_fallthru
      _
    // Predicated region
    $region70: #{tpu_custom_call.1} parent=1 // pred_check
      _
    $region71: #{tpu_custom_call.1} parent=1 // pred_check_branch
      %2523 = sbr.rel (0) target = $region73
    $region72: #{tpu_custom_call.1} parent=1 // pred_region
      %s2525 = ssub.s32 128, 128
      %2526 = vsyncadd [#allocation15], %s2525
      %s2528 = sshll.u32 [#allocation14], 4
      %s2529 = int_to_ptr.vmem [resolvable:$true] %s2528
      %2531 = dma.vmem_to_hbm [thread:$0]  %s2529, 128, %s11, [#allocation15]
    $region73: #{tpu_custom_call.1} parent=1 // pred_fallthru
      _
    // Predicated region
    $region74: #{tpu_custom_call.1} parent=1 // pred_check
      _
    $region75: #{tpu_custom_call.1} parent=1 // pred_check_branch
      %2533 = sbr.rel (0) target = $region77
    $region76: #{tpu_custom_call.1} parent=1 // pred_region
      %s2535 = ssub.s32 128, 128
      %2536 = vsyncadd [#allocation15], %s2535
      %s2538 = sshll.u32 [#allocation16], 4
      %s2539 = int_to_ptr.vmem [resolvable:$true] %s2538
      %2541 = dma.vmem_to_hbm [thread:$0]  %s2539, 128, %s12, [#allocation15]
    $region77: #{tpu_custom_call.1} parent=1 // pred_fallthru
      _
    // Predicated region
    $region78: #{tpu_custom_call.1} parent=1 // pred_check
      _
    $region79: #{tpu_custom_call.1} parent=1 // pred_check_branch
      %2543 = sbr.rel (0) target = $region81
    $region80: #{tpu_custom_call.1} parent=1 // pred_region
      %2544 = dma.done [#allocation4], 1024
    $region81: #{tpu_custom_call.1} parent=1 // pred_fallthru
      _
    // Predicated region
    $region82: #{tpu_custom_call.1} parent=1 // pred_check
      _
    $region83: #{tpu_custom_call.1} parent=1 // pred_check_branch
      %2546 = sbr.rel (0) target = $region85
    $region84: #{tpu_custom_call.1} parent=1 // pred_region
      %2547 = dma.done [#allocation15], 128
    $region85: #{tpu_custom_call.1} parent=1 // pred_fallthru
      _
    // Predicated region
    $region86: #{tpu_custom_call.1} parent=1 // pred_check
      _
    $region87: #{tpu_custom_call.1} parent=1 // pred_check_branch
      %2549 = sbr.rel (0) target = $region89
    $region88: #{tpu_custom_call.1} parent=1 // pred_region
      %2550 = dma.done [#allocation15], 128
    $region89: #{tpu_custom_call.1} parent=1 // pred_fallthru
      _
    %2551 = vsyncpa [#allocation3], 1
    %2552 = vsyncpa [#allocation6], 1
    %2553 = vsyncpa [#allocation9], 1
    %2554 = vsyncpa [#allocation12], 1
    %2555 = vsyncpa [#allocation4], 1
    %2556 = vsyncpa [#allocation15], 1

</llo_original>
